<compile_context>
chip_gen: v7x
topology: tpu7x:2x2x1
jax: 0.10.0
libtpu: 0.0.40
codegen_flags: <defaults>
</compile_context>

<pallas_src>
import functools

import jax
import jax.numpy as jnp
from jax.experimental import pallas as pl
from jax.experimental.pallas import tpu as pltpu


def _round_up(x, m):
    return (x + m - 1) // m * m


def channel_attention_kernel(x_ref, w1_ref, b1_ref, w2_ref, b2_ref, o_ref, *, C, L):
    # x_ref: (TB, C*L) lane-dense tile in the input dtype.
    x_flat = x_ref[...]
    tb = x_flat.shape[0]
    # On-chip relayout only; HBM side stays lane-dense.
    x3 = x_flat.reshape(tb, C, L)

    # Pooling: mean accumulates in f32; max needs no upcast.
    avg_pool = jnp.mean(x3, axis=-1, dtype=jnp.float32)        # (TB, C)
    max_pool = jnp.max(x3, axis=-1).astype(jnp.float32)        # (TB, C)

    w1 = w1_ref[...]                                           # (C, H)
    b1 = b1_ref[...]                                           # (1, H)
    w2 = w2_ref[...]                                           # (H, C)
    b2 = b2_ref[...]                                           # (1, C)

    def mlp(p):
        h = jnp.dot(p, w1, preferred_element_type=jnp.float32) + b1
        h = jnp.maximum(h, 0.0)                                # ReLU
        return jnp.dot(h, w2, preferred_element_type=jnp.float32) + b2

    gate = jax.nn.sigmoid(mlp(avg_pool) + mlp(max_pool))       # (TB, C), f32

    # Broadcast-multiply in the input dtype; store back lane-dense.
    gated = gate.astype(x_flat.dtype)[:, :, None] * x3         # (TB, C, L)
    o_ref[...] = gated.reshape(tb, C * L).astype(o_ref.dtype)


def _vmem_capacity_bytes():
    try:
        return int(pltpu.get_tpu_info().vmem_capacity_bytes)
    except Exception:
        return 64 << 20  # conservative fallback = v7x per-TensorCore VMEM


def _pick_batch_tile(B, C, L, itemsize, weight_bytes, vmem_cap,
                     target_tile_bytes=8 << 20, min_steps=8):
    """Largest batch tile whose *padded* VMEM footprint fits the budget."""
    lane = 128
    sub = max(8, 32 // max(itemsize, 1))               # 8 f32, 16 bf16, 32 int8
    row_dense = _round_up(C * L, lane) * itemsize       # flat tile, per batch row
    row_temp3d = C * _round_up(L, lane) * itemsize      # in-kernel (C, L) view, lane-padded
    # 2x double-buffered input + 2x output tiles + two full-tile 3-D temporaries.
    per_row = 4 * row_dense + 2 * row_temp3d
    budget = vmem_cap - 2 * weight_bytes - (2 << 20)
    tb_vmem = max(1, budget // per_row)
    tb_target = max(1, target_tile_bytes // row_dense)
    tb = int(min(tb_vmem, tb_target, B))
    # Keep >= min_steps grid steps (feeds both TensorCores on v7x) as long as
    # tiles stay sublane-aligned.
    if B >= min_steps * sub:
        tb = min(tb, -(-B // min_steps))
    if tb >= sub:
        tb = (tb // sub) * sub                           # sublane-aligned rows
    return max(1, tb)


def channel_attention(x, w1, b1, w2, b2):
    """x: (B, C, L); w1: (C, H); b1: (H,); w2: (H, C); b2: (C,)."""
    B, C, L = x.shape
    H = w1.shape[1]
    b1_2d = b1.reshape(1, H)
    b2_2d = b2.reshape(1, C)

    # Lane-dense layout: merging the two minor contiguous dims is free.
    x_flat = x.reshape(B, C * L)

    itemsize = jnp.dtype(x.dtype).itemsize
    weight_bytes = (w1.size * w1.dtype.itemsize + b1.size * b1.dtype.itemsize
                    + w2.size * w2.dtype.itemsize + b2.size * b2.dtype.itemsize)

    vmem_cap = int(0.8 * _vmem_capacity_bytes())         # per-generation cap
    TB = _pick_batch_tile(B, C, L, itemsize, weight_bytes, vmem_cap)
    grid = (pl.cdiv(B, TB),)                             # ragged last block is clipped

    # Padded VMEM footprint: pipeline buffers + in-kernel temporaries + weights.
    lane = 128
    sub = max(8, 32 // max(itemsize, 1))
    tile_dense = _round_up(TB, sub) * _round_up(C * L, lane) * itemsize
    tile_temp3d = _round_up(TB, sub) * C * _round_up(L, lane) * itemsize
    vmem_needed = 4 * tile_dense + 2 * tile_temp3d + 2 * weight_bytes + (2 << 20)
    # Always pass an explicit limit (v5e default is only 16 MiB), clamped to
    # the physical-VMEM-derived cap (v7x has 64 MiB per TensorCore).
    vmem_limit = int(min(max(vmem_needed, 32 << 20), vmem_cap))

    cost = pl.CostEstimate(
        flops=8 * B * C * H + 3 * B * C * L,
        transcendentals=B * C,
        bytes_accessed=2 * B * C * L * itemsize + weight_bytes,
    )

    kernel = functools.partial(channel_attention_kernel, C=C, L=L)

    out_flat = pl.pallas_call(
        kernel,
        out_shape=jax.ShapeDtypeStruct((B, C * L), x.dtype),
        grid_spec=pltpu.PrefetchScalarGridSpec(
            num_scalar_prefetch=0,
            grid=grid,
            in_specs=[
                pl.BlockSpec((TB, C * L), lambda b: (b, 0)),
                # Weights/biases: constant block index -> DMA'd once, stay resident.
                pl.BlockSpec((C, H), lambda b: (0, 0)),
                pl.BlockSpec((1, H), lambda b: (0, 0)),
                pl.BlockSpec((H, C), lambda b: (0, 0)),
                pl.BlockSpec((1, C), lambda b: (0, 0)),
            ],
            out_specs=pl.BlockSpec((TB, C * L), lambda b: (b, 0)),
        ),
        compiler_params=pltpu.CompilerParams(
            dimension_semantics=("parallel",),   # shards grid across TCs on v7x
            vmem_limit_bytes=vmem_limit,
        ),
        cost_estimate=cost,
    )(x_flat, w1, b1_2d, w2, b2_2d)

    return out_flat.reshape(B, C, L)


def channel_attention_ref(x, w1, b1, w2, b2):
    """Pure-JAX reference mirroring the PyTorch forward."""
    def mlp(p):
        h = jnp.maximum(p @ w1 + b1, 0.0)
        return h @ w2 + b2

    avg_out = mlp(x.mean(-1))
    max_out = mlp(x.max(-1))
    gate = jax.nn.sigmoid(avg_out + max_out)
    return gate[:, :, None] * x


if __name__ == "__main__":
    # Small shapes consistent with the module: channels divisible by ratio=16.
    B, C, L = 2, 64, 16
    ratio = 16
    H = C // ratio  # hidden = 4

    key = jax.random.PRNGKey(0)
    kx, k1, k2 = jax.random.split(key, 3)

    x = jax.random.normal(kx, (B, C, L), dtype=jnp.float32)

    # Deterministic synthetic weights (PyTorch Linear stores (out, in); we use (in, out)).
    w1 = jax.random.normal(k1, (C, H), dtype=jnp.float32) * (1.0 / jnp.sqrt(C))
    w2 = jax.random.normal(k2, (H, C), dtype=jnp.float32) * (1.0 / jnp.sqrt(H))
    # bias=True path: nn.init.constant_(bias, 0)
    b1 = jnp.zeros((H,), dtype=jnp.float32)
    b2 = jnp.zeros((C,), dtype=jnp.float32)

    out = jax.block_until_ready(channel_attention(x, w1, b1, w2, b2))

    ref = channel_attention_ref(x, w1, b1, w2, b2)
    assert out.shape == (B, C, L)
    assert jnp.allclose(out, ref, atol=1e-5, rtol=1e-5), "mismatch vs reference"

    print("KERNEL_OK")
</pallas_src>

<mosaic_0001>
module attributes {stable_mosaic.version = 11 : i64} {
  func.func @channel_attention_kernel(%arg0: i32, %arg1: memref<2x1024xf32, #tpu.memory_space<vmem>>, %arg2: memref<64x4xf32, #tpu.memory_space<vmem>>, %arg3: memref<1x4xf32, #tpu.memory_space<vmem>>, %arg4: memref<4x64xf32, #tpu.memory_space<vmem>>, %arg5: memref<1x64xf32, #tpu.memory_space<vmem>>, %arg6: memref<2x1024xf32, #tpu.memory_space<vmem>>) attributes {dimension_semantics = [#tpu.dimension_semantics<parallel>], iteration_bounds = array<i64: 1>, scalar_prefetch = 0 : i64, scratch_operands = 0 : i64, tpu.core_type = #tpu.core_type<tc>, window_params = [{transform_indices = @transform_0, window_bounds = array<i64: 2, 1024>}, {pipeline_mode = #tpu.pipeline_mode<synchronous>, transform_indices = @transform_1, window_bounds = array<i64: 64, 4>}, {pipeline_mode = #tpu.pipeline_mode<synchronous>, transform_indices = @transform_2, window_bounds = array<i64: 1, 4>}, {pipeline_mode = #tpu.pipeline_mode<synchronous>, transform_indices = @transform_3, window_bounds = array<i64: 4, 64>}, {pipeline_mode = #tpu.pipeline_mode<synchronous>, transform_indices = @transform_4, window_bounds = array<i64: 1, 64>}, {transform_indices = @transform_5, window_bounds = array<i64: 2, 1024>}]} {
    %c0 = arith.constant 0 : index
    %c0_0 = arith.constant 0 : index
    %0 = vector.load %arg1[%c0, %c0_0] : memref<2x1024xf32, #tpu.memory_space<vmem>>, vector<2x1024xf32>
    %1 = vector.shape_cast %0 : vector<2x1024xf32> to vector<2x64x16xf32>
    %cst = arith.constant dense<0.000000e+00> : vector<2x64xf32>
    %2 = vector.multi_reduction <add>, %1, %cst [2] : vector<2x64x16xf32> to vector<2x64xf32>
    %cst_1 = arith.constant 1.600000e+01 : f32
    %3 = vector.broadcast %cst_1 : f32 to vector<2x64xf32>
    %4 = arith.divf %2, %3 : vector<2x64xf32>
    %cst_2 = arith.constant dense<0xFF800000> : vector<2x64xf32>
    %5 = vector.multi_reduction <maximumf>, %1, %cst_2 [2] : vector<2x64x16xf32> to vector<2x64xf32>
    %c0_3 = arith.constant 0 : index
    %c0_4 = arith.constant 0 : index
    %6 = vector.load %arg2[%c0_3, %c0_4] : memref<64x4xf32, #tpu.memory_space<vmem>>, vector<64x4xf32>
    %c0_5 = arith.constant 0 : index
    %c0_6 = arith.constant 0 : index
    %7 = vector.load %arg3[%c0_5, %c0_6] : memref<1x4xf32, #tpu.memory_space<vmem>>, vector<1x4xf32>
    %c0_7 = arith.constant 0 : index
    %c0_8 = arith.constant 0 : index
    %8 = vector.load %arg4[%c0_7, %c0_8] : memref<4x64xf32, #tpu.memory_space<vmem>>, vector<4x64xf32>
    %c0_9 = arith.constant 0 : index
    %c0_10 = arith.constant 0 : index
    %9 = vector.load %arg5[%c0_9, %c0_10] : memref<1x64xf32, #tpu.memory_space<vmem>>, vector<1x64xf32>
    %cst_11 = arith.constant dense<0.000000e+00> : vector<2x4xf32>
    %10 = tpu.matmul %4, %6, %cst_11 {dimension_numbers = #tpu.dot_dimension_numbers<[1], [0], [0], [1], [0, 0, 1, 1], [], []>} : vector<2x64xf32>, vector<64x4xf32>, vector<2x4xf32> -> vector<2x4xf32>
    %11 = vector.broadcast %7 : vector<1x4xf32> to vector<2x4xf32>
    %12 = arith.addf %10, %11 : vector<2x4xf32>
    %cst_12 = arith.constant 0.000000e+00 : f32
    %13 = vector.broadcast %cst_12 : f32 to vector<2x4xf32>
    %14 = arith.maximumf %12, %13 : vector<2x4xf32>
    %cst_13 = arith.constant dense<0.000000e+00> : vector<2x64xf32>
    %15 = tpu.matmul %14, %8, %cst_13 {dimension_numbers = #tpu.dot_dimension_numbers<[1], [0], [0], [1], [0, 0, 1, 1], [], []>} : vector<2x4xf32>, vector<4x64xf32>, vector<2x64xf32> -> vector<2x64xf32>
    %16 = vector.broadcast %9 : vector<1x64xf32> to vector<2x64xf32>
    %17 = arith.addf %15, %16 : vector<2x64xf32>
    %cst_14 = arith.constant dense<0.000000e+00> : vector<2x4xf32>
    %18 = tpu.matmul %5, %6, %cst_14 {dimension_numbers = #tpu.dot_dimension_numbers<[1], [0], [0], [1], [0, 0, 1, 1], [], []>} : vector<2x64xf32>, vector<64x4xf32>, vector<2x4xf32> -> vector<2x4xf32>
    %19 = vector.broadcast %7 : vector<1x4xf32> to vector<2x4xf32>
    %20 = arith.addf %18, %19 : vector<2x4xf32>
    %cst_15 = arith.constant 0.000000e+00 : f32
    %21 = vector.broadcast %cst_15 : f32 to vector<2x4xf32>
    %22 = arith.maximumf %20, %21 : vector<2x4xf32>
    %cst_16 = arith.constant dense<0.000000e+00> : vector<2x64xf32>
    %23 = tpu.matmul %22, %8, %cst_16 {dimension_numbers = #tpu.dot_dimension_numbers<[1], [0], [0], [1], [0, 0, 1, 1], [], []>} : vector<2x4xf32>, vector<4x64xf32>, vector<2x64xf32> -> vector<2x64xf32>
    %24 = vector.broadcast %9 : vector<1x64xf32> to vector<2x64xf32>
    %25 = arith.addf %23, %24 : vector<2x64xf32>
    %26 = arith.addf %17, %25 : vector<2x64xf32>
    %27 = arith.negf %26 : vector<2x64xf32>
    %28 = math.exp %27 : vector<2x64xf32>
    %cst_17 = arith.constant 1.000000e+00 : f32
    %29 = vector.broadcast %cst_17 : f32 to vector<2x64xf32>
    %30 = arith.addf %29, %28 : vector<2x64xf32>
    %31 = arith.divf %29, %30 : vector<2x64xf32>
    %32 = vector.shape_cast %31 : vector<2x64xf32> to vector<2x64x1xf32>
    %33 = vector.broadcast %32 : vector<2x64x1xf32> to vector<2x64x16xf32>
    %34 = arith.mulf %33, %1 : vector<2x64x16xf32>
    %35 = vector.shape_cast %34 : vector<2x64x16xf32> to vector<2x1024xf32>
    %c0_18 = arith.constant 0 : index
    %c0_19 = arith.constant 0 : index
    %36 = vector.load %arg6[%c0_18, %c0_19] : memref<2x1024xf32, #tpu.memory_space<vmem>>, vector<2x1024xf32>
    tpu.vector_store %arg6[%c0_18, %c0_19], %35 {strides = array<i32>} : memref<2x1024xf32, #tpu.memory_space<vmem>>, vector<2x1024xf32>,
    return
  }
  func.func @transform_0(%arg0: i32) -> (i32, i32) {
    %c0_i32 = arith.constant 0 : i32
    %c0_i32_0 = arith.constant 0 : i32
    return %arg0, %c0_i32 : i32, i32
  }
  func.func @transform_1(%arg0: i32) -> (i32, i32) {
    %c0_i32 = arith.constant 0 : i32
    %c0_i32_0 = arith.constant 0 : i32
    %c0_i32_1 = arith.constant 0 : i32
    return %c0_i32, %c0_i32_0 : i32, i32
  }
  func.func @transform_2(%arg0: i32) -> (i32, i32) {
    %c0_i32 = arith.constant 0 : i32
    %c0_i32_0 = arith.constant 0 : i32
    %c0_i32_1 = arith.constant 0 : i32
    return %c0_i32, %c0_i32_0 : i32, i32
  }
  func.func @transform_3(%arg0: i32) -> (i32, i32) {
    %c0_i32 = arith.constant 0 : i32
    %c0_i32_0 = arith.constant 0 : i32
    %c0_i32_1 = arith.constant 0 : i32
    return %c0_i32, %c0_i32_0 : i32, i32
  }
  func.func @transform_4(%arg0: i32) -> (i32, i32) {
    %c0_i32 = arith.constant 0 : i32
    %c0_i32_0 = arith.constant 0 : i32
    %c0_i32_1 = arith.constant 0 : i32
    return %c0_i32, %c0_i32_0 : i32, i32
  }
  func.func @transform_5(%arg0: i32) -> (i32, i32) {
    %c0_i32 = arith.constant 0 : i32
    %c0_i32_0 = arith.constant 0 : i32
    return %arg0, %c0_i32 : i32, i32
  }
}

</mosaic_0001>

<llo_original>
// kernel: tpu_custom_call.1
$region0: #{tpu_custom_call.1}
  #allocation0 [shape = 'u32[]', space=smem, size = 0x4, offset = 0x4, fixed_abs, tag = 'smem constant byte address 0x4 - core index']
  #allocation1 [shape = 'u32[144,128]{1,0:T(1,128)}', space=vmem, size = 0x12000, scoped, tag = 'internal scratch']
  %s0 = inlined_call_operand.vmem [shape: f32[2,1024], index: 0, kind: input, shape index: {}]
  %s1 = inlined_call_operand.vmem [shape: f32[64,4], index: 1, kind: input, shape index: {}]
  %s2 = inlined_call_operand.vmem [shape: f32[1,4], index: 2, kind: input, shape index: {}]
  %s3 = inlined_call_operand.vmem [shape: f32[4,64], index: 3, kind: input, shape index: {}]
  %s4 = inlined_call_operand.vmem [shape: f32[1,64], index: 4, kind: input, shape index: {}]
  %s5 = inlined_call_operand.hbm [shape: f32[2,1024], index: 5, kind: output, shape index: {}]
  %s6 = sld [smem:[#allocation0]]
  $region30: #{tpu_custom_call.1} parent=0
    _
  %s8 = ssub.s32 1, %s6
  %s9 = scalar_select 0, %s8, %s6
  $region1: #{tpu_custom_call.1} parent=0
    #allocation2 [shape = 'u8[8192]{0}', space=vmem, size = 0x2000, scoped, tag = 'output window, operand 0, single buffered']
    #allocation3 [shape = 's32[1]{0}', space=sflag, size = 0x4, scoped, tag = 'scoped memory for tpu_custom_call.1']
    %10 = vsyncpa [#allocation3], 0
    // Predicated region
    $region2: #{tpu_custom_call.1} parent=1 // pred_check
      _
    $region3: #{tpu_custom_call.1} parent=1 // pred_check_branch
      %12 = sbr.rel (0) target = $region5
    $region4: #{tpu_custom_call.1} parent=1 // pred_region
      _
    $region5: #{tpu_custom_call.1} parent=1 // pred_fallthru
      _
    // Predicated region
    $region6: #{tpu_custom_call.1} parent=1 // pred_check
      _
    $region7: #{tpu_custom_call.1} parent=1 // pred_check_branch
      %14 = sbr.rel (0) target = $region9
    $region8: #{tpu_custom_call.1} parent=1 // pred_region
      _
    $region9: #{tpu_custom_call.1} parent=1 // pred_fallthru
      _
    // Predicated region
    $region10: #{tpu_custom_call.1} parent=1 // pred_check
      _
    $region11: #{tpu_custom_call.1} parent=1 // pred_check_branch
      %16 = sbr.rel (0) target = $region13
    $region12: #{tpu_custom_call.1} parent=1 // pred_region
      _
    $region13: #{tpu_custom_call.1} parent=1 // pred_fallthru
      _
    // Predicated region
    $region14: #{tpu_custom_call.1} parent=1 // pred_check
      _
    $region15: #{tpu_custom_call.1} parent=1 // pred_check_branch
      %18 = sbr.rel (0) target = $region17
    $region16: #{tpu_custom_call.1} parent=1 // pred_region
      _
    $region17: #{tpu_custom_call.1} parent=1 // pred_fallthru
      _
    // Predicated region
    $region18: #{tpu_custom_call.1} parent=1 // pred_check
      _
    $region19: #{tpu_custom_call.1} parent=1 // pred_check_branch
      %20 = sbr.rel (0) target = $region21
    $region20: #{tpu_custom_call.1} parent=1 // pred_region
      _
    $region21: #{tpu_custom_call.1} parent=1 // pred_fallthru
      _
    %v21 = vld [vmem:[%s0] sm:$0xff]
    %v22 = vld [vmem:[%s0 + $0x8] sm:$0xff]
    %v24 = vrot.slane %v21, 2
    %26 = vrot.lane.b32.xlu0 %v21, 112
    %v27 = vpop.permute.xlu0 %26
    %v28 = vrot.slane %v27, 2
    %30 = vrot.lane.b32.xlu0 %v21, 96
    %v31 = vpop.permute.xlu0 %30
    %v32 = vrot.slane %v31, 2
    %34 = vrot.lane.b32.xlu0 %v21, 80
    %v35 = vpop.permute.xlu0 %34
    %v36 = vrot.slane %v35, 2
    %38 = vrot.lane.b32.xlu0 %v21, 64
    %v39 = vpop.permute.xlu0 %38
    %v40 = vrot.slane %v39, 2
    %42 = vrot.lane.b32.xlu0 %v21, 48
    %v43 = vpop.permute.xlu0 %42
    %v44 = vrot.slane %v43, 2
    %46 = vrot.lane.b32.xlu0 %v21, 32
    %v47 = vpop.permute.xlu0 %46
    %v48 = vrot.slane %v47, 2
    %50 = vrot.lane.b32.xlu0 %v21, 16
    %v51 = vpop.permute.xlu0 %50
    %v52 = vrot.slane %v51, 2
    %v54 = vrot.slane %v21, 4
    %v56 = vrot.slane %v27, 4
    %v58 = vrot.slane %v31, 4
    %v60 = vrot.slane %v35, 4
    %v62 = vrot.slane %v39, 4
    %v64 = vrot.slane %v43, 4
    %v66 = vrot.slane %v47, 4
    %v68 = vrot.slane %v51, 4
    %v70 = vrot.slane %v21, 6
    %v72 = vrot.slane %v27, 6
    %v74 = vrot.slane %v31, 6
    %v76 = vrot.slane %v35, 6
    %v78 = vrot.slane %v39, 6
    %v80 = vrot.slane %v43, 6
    %v82 = vrot.slane %v47, 6
    %v84 = vrot.slane %v51, 6
    %v87 = vrot.slane %v22, 2
    %89 = vrot.lane.b32.xlu0 %v22, 112
    %v90 = vpop.permute.xlu0 %89
    %v91 = vrot.slane %v90, 2
    %93 = vrot.lane.b32.xlu0 %v22, 96
    %v94 = vpop.permute.xlu0 %93
    %v95 = vrot.slane %v94, 2
    %97 = vrot.lane.b32.xlu0 %v22, 80
    %v98 = vpop.permute.xlu0 %97
    %v99 = vrot.slane %v98, 2
    %101 = vrot.lane.b32.xlu0 %v22, 64
    %v102 = vpop.permute.xlu0 %101
    %v103 = vrot.slane %v102, 2
    %105 = vrot.lane.b32.xlu0 %v22, 48
    %v106 = vpop.permute.xlu0 %105
    %v107 = vrot.slane %v106, 2
    %109 = vrot.lane.b32.xlu0 %v22, 32
    %v110 = vpop.permute.xlu0 %109
    %v111 = vrot.slane %v110, 2
    %113 = vrot.lane.b32.xlu0 %v22, 16
    %v114 = vpop.permute.xlu0 %113
    %v115 = vrot.slane %v114, 2
    %v117 = vrot.slane %v22, 4
    %v119 = vrot.slane %v90, 4
    %v121 = vrot.slane %v94, 4
    %v123 = vrot.slane %v98, 4
    %v125 = vrot.slane %v102, 4
    %v127 = vrot.slane %v106, 4
    %v129 = vrot.slane %v110, 4
    %v131 = vrot.slane %v114, 4
    %v133 = vrot.slane %v22, 6
    %v135 = vrot.slane %v90, 6
    %v137 = vrot.slane %v94, 6
    %v139 = vrot.slane %v98, 6
    %v141 = vrot.slane %v102, 6
    %v143 = vrot.slane %v106, 6
    %v145 = vrot.slane %v110, 6
    %v147 = vrot.slane %v114, 6
    %v163 = vcombine.low %v21, %v27
    %v165 = vunpack.c.l.s4 1934713408
    %v166 = vunpack.c.0.s8 %v165
    %v167 = vlaneseq
    %v168 = vshrl.u32 %v167, 7
    %v169 = vsub.s32 %v166, %v168
    %v170 = vrot.slane %v163, %v169
    %v171 = vcombine.high %v170, 0.0
    %v172 = vcombine.low %v31, %v35
    %v174 = vunpack.c.l.s4 1934713408
    %v175 = vunpack.c.0.s8 %v174
    %v176 = vlaneseq
    %v177 = vshrl.u32 %v176, 7
    %v178 = vsub.s32 %v175, %v177
    %v179 = vrot.slane %v172, %v178
    %v180 = vcombine.high %v179, 0.0
    %v181 = vcombine.low %v39, %v43
    %v183 = vunpack.c.l.s4 1934713408
    %v184 = vunpack.c.0.s8 %v183
    %v185 = vlaneseq
    %v186 = vshrl.u32 %v185, 7
    %v187 = vsub.s32 %v184, %v186
    %v188 = vrot.slane %v181, %v187
    %v189 = vcombine.high %v188, 0.0
    %v190 = vcombine.low %v47, %v51
    %v192 = vunpack.c.l.s4 1934713408
    %v193 = vunpack.c.0.s8 %v192
    %v194 = vlaneseq
    %v195 = vshrl.u32 %v194, 7
    %v196 = vsub.s32 %v193, %v195
    %v197 = vrot.slane %v190, %v196
    %v198 = vcombine.high %v197, 0.0
    %v199 = vcombine.low %v24, %v28
    %v201 = vunpack.c.l.s4 1934713408
    %v202 = vunpack.c.0.s8 %v201
    %v203 = vlaneseq
    %v204 = vshrl.u32 %v203, 7
    %v205 = vsub.s32 %v202, %v204
    %v206 = vrot.slane %v199, %v205
    %v207 = vcombine.high %v206, 0.0
    %v208 = vcombine.low %v32, %v36
    %v210 = vunpack.c.l.s4 1934713408
    %v211 = vunpack.c.0.s8 %v210
    %v212 = vlaneseq
    %v213 = vshrl.u32 %v212, 7
    %v214 = vsub.s32 %v211, %v213
    %v215 = vrot.slane %v208, %v214
    %v216 = vcombine.high %v215, 0.0
    %v217 = vcombine.low %v40, %v44
    %v219 = vunpack.c.l.s4 1934713408
    %v220 = vunpack.c.0.s8 %v219
    %v221 = vlaneseq
    %v222 = vshrl.u32 %v221, 7
    %v223 = vsub.s32 %v220, %v222
    %v224 = vrot.slane %v217, %v223
    %v225 = vcombine.high %v224, 0.0
    %v226 = vcombine.low %v48, %v52
    %v228 = vunpack.c.l.s4 1934713408
    %v229 = vunpack.c.0.s8 %v228
    %v230 = vlaneseq
    %v231 = vshrl.u32 %v230, 7
    %v232 = vsub.s32 %v229, %v231
    %v233 = vrot.slane %v226, %v232
    %v234 = vcombine.high %v233, 0.0
    %v235 = vcombine.low %v54, %v56
    %v237 = vunpack.c.l.s4 1934713408
    %v238 = vunpack.c.0.s8 %v237
    %v239 = vlaneseq
    %v240 = vshrl.u32 %v239, 7
    %v241 = vsub.s32 %v238, %v240
    %v242 = vrot.slane %v235, %v241
    %v243 = vcombine.high %v242, 0.0
    %v244 = vcombine.low %v58, %v60
    %v246 = vunpack.c.l.s4 1934713408
    %v247 = vunpack.c.0.s8 %v246
    %v248 = vlaneseq
    %v249 = vshrl.u32 %v248, 7
    %v250 = vsub.s32 %v247, %v249
    %v251 = vrot.slane %v244, %v250
    %v252 = vcombine.high %v251, 0.0
    %v253 = vcombine.low %v62, %v64
    %v255 = vunpack.c.l.s4 1934713408
    %v256 = vunpack.c.0.s8 %v255
    %v257 = vlaneseq
    %v258 = vshrl.u32 %v257, 7
    %v259 = vsub.s32 %v256, %v258
    %v260 = vrot.slane %v253, %v259
    %v261 = vcombine.high %v260, 0.0
    %v262 = vcombine.low %v66, %v68
    %v264 = vunpack.c.l.s4 1934713408
    %v265 = vunpack.c.0.s8 %v264
    %v266 = vlaneseq
    %v267 = vshrl.u32 %v266, 7
    %v268 = vsub.s32 %v265, %v267
    %v269 = vrot.slane %v262, %v268
    %v270 = vcombine.high %v269, 0.0
    %v271 = vcombine.low %v70, %v72
    %v273 = vunpack.c.l.s4 1934713408
    %v274 = vunpack.c.0.s8 %v273
    %v275 = vlaneseq
    %v276 = vshrl.u32 %v275, 7
    %v277 = vsub.s32 %v274, %v276
    %v278 = vrot.slane %v271, %v277
    %v279 = vcombine.high %v278, 0.0
    %v280 = vcombine.low %v74, %v76
    %v282 = vunpack.c.l.s4 1934713408
    %v283 = vunpack.c.0.s8 %v282
    %v284 = vlaneseq
    %v285 = vshrl.u32 %v284, 7
    %v286 = vsub.s32 %v283, %v285
    %v287 = vrot.slane %v280, %v286
    %v288 = vcombine.high %v287, 0.0
    %v289 = vcombine.low %v78, %v80
    %v291 = vunpack.c.l.s4 1934713408
    %v292 = vunpack.c.0.s8 %v291
    %v293 = vlaneseq
    %v294 = vshrl.u32 %v293, 7
    %v295 = vsub.s32 %v292, %v294
    %v296 = vrot.slane %v289, %v295
    %v297 = vcombine.high %v296, 0.0
    %v298 = vcombine.low %v82, %v84
    %v300 = vunpack.c.l.s4 1934713408
    %v301 = vunpack.c.0.s8 %v300
    %v302 = vlaneseq
    %v303 = vshrl.u32 %v302, 7
    %v304 = vsub.s32 %v301, %v303
    %v305 = vrot.slane %v298, %v304
    %v306 = vcombine.high %v305, 0.0
    %v307 = vcombine.low %v22, %v90
    %v309 = vunpack.c.l.s4 1934713408
    %v310 = vunpack.c.0.s8 %v309
    %v311 = vlaneseq
    %v312 = vshrl.u32 %v311, 7
    %v313 = vsub.s32 %v310, %v312
    %v314 = vrot.slane %v307, %v313
    %v315 = vcombine.high %v314, 0.0
    %v316 = vcombine.low %v94, %v98
    %v318 = vunpack.c.l.s4 1934713408
    %v319 = vunpack.c.0.s8 %v318
    %v320 = vlaneseq
    %v321 = vshrl.u32 %v320, 7
    %v322 = vsub.s32 %v319, %v321
    %v323 = vrot.slane %v316, %v322
    %v324 = vcombine.high %v323, 0.0
    %v325 = vcombine.low %v102, %v106
    %v327 = vunpack.c.l.s4 1934713408
    %v328 = vunpack.c.0.s8 %v327
    %v329 = vlaneseq
    %v330 = vshrl.u32 %v329, 7
    %v331 = vsub.s32 %v328, %v330
    %v332 = vrot.slane %v325, %v331
    %v333 = vcombine.high %v332, 0.0
    %v334 = vcombine.low %v110, %v114
    %v336 = vunpack.c.l.s4 1934713408
    %v337 = vunpack.c.0.s8 %v336
    %v338 = vlaneseq
    %v339 = vshrl.u32 %v338, 7
    %v340 = vsub.s32 %v337, %v339
    %v341 = vrot.slane %v334, %v340
    %v342 = vcombine.high %v341, 0.0
    %v343 = vcombine.low %v87, %v91
    %v345 = vunpack.c.l.s4 1934713408
    %v346 = vunpack.c.0.s8 %v345
    %v347 = vlaneseq
    %v348 = vshrl.u32 %v347, 7
    %v349 = vsub.s32 %v346, %v348
    %v350 = vrot.slane %v343, %v349
    %v351 = vcombine.high %v350, 0.0
    %v352 = vcombine.low %v95, %v99
    %v354 = vunpack.c.l.s4 1934713408
    %v355 = vunpack.c.0.s8 %v354
    %v356 = vlaneseq
    %v357 = vshrl.u32 %v356, 7
    %v358 = vsub.s32 %v355, %v357
    %v359 = vrot.slane %v352, %v358
    %v360 = vcombine.high %v359, 0.0
    %v361 = vcombine.low %v103, %v107
    %v363 = vunpack.c.l.s4 1934713408
    %v364 = vunpack.c.0.s8 %v363
    %v365 = vlaneseq
    %v366 = vshrl.u32 %v365, 7
    %v367 = vsub.s32 %v364, %v366
    %v368 = vrot.slane %v361, %v367
    %v369 = vcombine.high %v368, 0.0
    %v370 = vcombine.low %v111, %v115
    %v372 = vunpack.c.l.s4 1934713408
    %v373 = vunpack.c.0.s8 %v372
    %v374 = vlaneseq
    %v375 = vshrl.u32 %v374, 7
    %v376 = vsub.s32 %v373, %v375
    %v377 = vrot.slane %v370, %v376
    %v378 = vcombine.high %v377, 0.0
    %v379 = vcombine.low %v117, %v119
    %v381 = vunpack.c.l.s4 1934713408
    %v382 = vunpack.c.0.s8 %v381
    %v383 = vlaneseq
    %v384 = vshrl.u32 %v383, 7
    %v385 = vsub.s32 %v382, %v384
    %v386 = vrot.slane %v379, %v385
    %v387 = vcombine.high %v386, 0.0
    %v388 = vcombine.low %v121, %v123
    %v390 = vunpack.c.l.s4 1934713408
    %v391 = vunpack.c.0.s8 %v390
    %v392 = vlaneseq
    %v393 = vshrl.u32 %v392, 7
    %v394 = vsub.s32 %v391, %v393
    %v395 = vrot.slane %v388, %v394
    %v396 = vcombine.high %v395, 0.0
    %v397 = vcombine.low %v125, %v127
    %v399 = vunpack.c.l.s4 1934713408
    %v400 = vunpack.c.0.s8 %v399
    %v401 = vlaneseq
    %v402 = vshrl.u32 %v401, 7
    %v403 = vsub.s32 %v400, %v402
    %v404 = vrot.slane %v397, %v403
    %v405 = vcombine.high %v404, 0.0
    %v406 = vcombine.low %v129, %v131
    %v408 = vunpack.c.l.s4 1934713408
    %v409 = vunpack.c.0.s8 %v408
    %v410 = vlaneseq
    %v411 = vshrl.u32 %v410, 7
    %v412 = vsub.s32 %v409, %v411
    %v413 = vrot.slane %v406, %v412
    %v414 = vcombine.high %v413, 0.0
    %v415 = vcombine.low %v133, %v135
    %v417 = vunpack.c.l.s4 1934713408
    %v418 = vunpack.c.0.s8 %v417
    %v419 = vlaneseq
    %v420 = vshrl.u32 %v419, 7
    %v421 = vsub.s32 %v418, %v420
    %v422 = vrot.slane %v415, %v421
    %v423 = vcombine.high %v422, 0.0
    %v424 = vcombine.low %v137, %v139
    %v426 = vunpack.c.l.s4 1934713408
    %v427 = vunpack.c.0.s8 %v426
    %v428 = vlaneseq
    %v429 = vshrl.u32 %v428, 7
    %v430 = vsub.s32 %v427, %v429
    %v431 = vrot.slane %v424, %v430
    %v432 = vcombine.high %v431, 0.0
    %v433 = vcombine.low %v141, %v143
    %v435 = vunpack.c.l.s4 1934713408
    %v436 = vunpack.c.0.s8 %v435
    %v437 = vlaneseq
    %v438 = vshrl.u32 %v437, 7
    %v439 = vsub.s32 %v436, %v438
    %v440 = vrot.slane %v433, %v439
    %v441 = vcombine.high %v440, 0.0
    %v442 = vcombine.low %v145, %v147
    %v444 = vunpack.c.l.s4 1934713408
    %v445 = vunpack.c.0.s8 %v444
    %v446 = vlaneseq
    %v447 = vshrl.u32 %v446, 7
    %v448 = vsub.s32 %v445, %v447
    %v449 = vrot.slane %v442, %v448
    %v450 = vcombine.high %v449, 0.0
    %v515 = vcombine.low %v170, %v179
    %v516 = vcombine.low %v188, %v197
    %v518 = vunpack.c.l.s4 1983009808
    %v519 = vunpack.c.0.s8 %v518
    %v520 = vlaneseq
    %v521 = vshrl.u32 %v520, 7
    %v522 = vsub.s32 %v519, %v521
    %v523 = vrot.slane %v515, %v522
    %v525 = vunpack.c.l.s4 1983009808
    %v526 = vunpack.c.0.s8 %v525
    %v527 = vlaneseq
    %v528 = vshrl.u32 %v527, 7
    %v529 = vsub.s32 %v526, %v528
    %v530 = vrot.slane %v516, %v529
    %v531 = vcombine.low %v523, %v530
    %v532 = vcombine.low %v206, %v215
    %v533 = vcombine.low %v224, %v233
    %v535 = vunpack.c.l.s4 1983009808
    %v536 = vunpack.c.0.s8 %v535
    %v537 = vlaneseq
    %v538 = vshrl.u32 %v537, 7
    %v539 = vsub.s32 %v536, %v538
    %v540 = vrot.slane %v532, %v539
    %v542 = vunpack.c.l.s4 1983009808
    %v543 = vunpack.c.0.s8 %v542
    %v544 = vlaneseq
    %v545 = vshrl.u32 %v544, 7
    %v546 = vsub.s32 %v543, %v545
    %v547 = vrot.slane %v533, %v546
    %v548 = vcombine.low %v540, %v547
    %v549 = vcombine.low %v242, %v251
    %v550 = vcombine.low %v260, %v269
    %v552 = vunpack.c.l.s4 1983009808
    %v553 = vunpack.c.0.s8 %v552
    %v554 = vlaneseq
    %v555 = vshrl.u32 %v554, 7
    %v556 = vsub.s32 %v553, %v555
    %v557 = vrot.slane %v549, %v556
    %v559 = vunpack.c.l.s4 1983009808
    %v560 = vunpack.c.0.s8 %v559
    %v561 = vlaneseq
    %v562 = vshrl.u32 %v561, 7
    %v563 = vsub.s32 %v560, %v562
    %v564 = vrot.slane %v550, %v563
    %v565 = vcombine.low %v557, %v564
    %v566 = vcombine.low %v278, %v287
    %v567 = vcombine.low %v296, %v305
    %v569 = vunpack.c.l.s4 1983009808
    %v570 = vunpack.c.0.s8 %v569
    %v571 = vlaneseq
    %v572 = vshrl.u32 %v571, 7
    %v573 = vsub.s32 %v570, %v572
    %v574 = vrot.slane %v566, %v573
    %v576 = vunpack.c.l.s4 1983009808
    %v577 = vunpack.c.0.s8 %v576
    %v578 = vlaneseq
    %v579 = vshrl.u32 %v578, 7
    %v580 = vsub.s32 %v577, %v579
    %v581 = vrot.slane %v567, %v580
    %v582 = vcombine.low %v574, %v581
    %v583 = vcombine.low %v314, %v323
    %v584 = vcombine.low %v332, %v341
    %v586 = vunpack.c.l.s4 1983009808
    %v587 = vunpack.c.0.s8 %v586
    %v588 = vlaneseq
    %v589 = vshrl.u32 %v588, 7
    %v590 = vsub.s32 %v587, %v589
    %v591 = vrot.slane %v583, %v590
    %v593 = vunpack.c.l.s4 1983009808
    %v594 = vunpack.c.0.s8 %v593
    %v595 = vlaneseq
    %v596 = vshrl.u32 %v595, 7
    %v597 = vsub.s32 %v594, %v596
    %v598 = vrot.slane %v584, %v597
    %v599 = vcombine.low %v591, %v598
    %v600 = vcombine.low %v350, %v359
    %v601 = vcombine.low %v368, %v377
    %v603 = vunpack.c.l.s4 1983009808
    %v604 = vunpack.c.0.s8 %v603
    %v605 = vlaneseq
    %v606 = vshrl.u32 %v605, 7
    %v607 = vsub.s32 %v604, %v606
    %v608 = vrot.slane %v600, %v607
    %v610 = vunpack.c.l.s4 1983009808
    %v611 = vunpack.c.0.s8 %v610
    %v612 = vlaneseq
    %v613 = vshrl.u32 %v612, 7
    %v614 = vsub.s32 %v611, %v613
    %v615 = vrot.slane %v601, %v614
    %v616 = vcombine.low %v608, %v615
    %v617 = vcombine.low %v386, %v395
    %v618 = vcombine.low %v404, %v413
    %v620 = vunpack.c.l.s4 1983009808
    %v621 = vunpack.c.0.s8 %v620
    %v622 = vlaneseq
    %v623 = vshrl.u32 %v622, 7
    %v624 = vsub.s32 %v621, %v623
    %v625 = vrot.slane %v617, %v624
    %v627 = vunpack.c.l.s4 1983009808
    %v628 = vunpack.c.0.s8 %v627
    %v629 = vlaneseq
    %v630 = vshrl.u32 %v629, 7
    %v631 = vsub.s32 %v628, %v630
    %v632 = vrot.slane %v618, %v631
    %v633 = vcombine.low %v625, %v632
    %v634 = vcombine.low %v422, %v431
    %v635 = vcombine.low %v440, %v449
    %v637 = vunpack.c.l.s4 1983009808
    %v638 = vunpack.c.0.s8 %v637
    %v639 = vlaneseq
    %v640 = vshrl.u32 %v639, 7
    %v641 = vsub.s32 %v638, %v640
    %v642 = vrot.slane %v634, %v641
    %v644 = vunpack.c.l.s4 1983009808
    %v645 = vunpack.c.0.s8 %v644
    %v646 = vlaneseq
    %v647 = vshrl.u32 %v646, 7
    %v648 = vsub.s32 %v645, %v647
    %v649 = vrot.slane %v635, %v648
    %v650 = vcombine.low %v642, %v649
    %v651 = vcombine.low %v171, %v180
    %v652 = vcombine.low %v189, %v198
    %v654 = vunpack.c.l.s4 1983009808
    %v655 = vunpack.c.0.s8 %v654
    %v656 = vlaneseq
    %v657 = vshrl.u32 %v656, 7
    %v658 = vsub.s32 %v655, %v657
    %v659 = vrot.slane %v651, %v658
    %v661 = vunpack.c.l.s4 1983009808
    %v662 = vunpack.c.0.s8 %v661
    %v663 = vlaneseq
    %v664 = vshrl.u32 %v663, 7
    %v665 = vsub.s32 %v662, %v664
    %v666 = vrot.slane %v652, %v665
    %v667 = vcombine.low %v659, %v666
    %v668 = vcombine.low %v207, %v216
    %v669 = vcombine.low %v225, %v234
    %v671 = vunpack.c.l.s4 1983009808
    %v672 = vunpack.c.0.s8 %v671
    %v673 = vlaneseq
    %v674 = vshrl.u32 %v673, 7
    %v675 = vsub.s32 %v672, %v674
    %v676 = vrot.slane %v668, %v675
    %v678 = vunpack.c.l.s4 1983009808
    %v679 = vunpack.c.0.s8 %v678
    %v680 = vlaneseq
    %v681 = vshrl.u32 %v680, 7
    %v682 = vsub.s32 %v679, %v681
    %v683 = vrot.slane %v669, %v682
    %v684 = vcombine.low %v676, %v683
    %v685 = vcombine.low %v243, %v252
    %v686 = vcombine.low %v261, %v270
    %v688 = vunpack.c.l.s4 1983009808
    %v689 = vunpack.c.0.s8 %v688
    %v690 = vlaneseq
    %v691 = vshrl.u32 %v690, 7
    %v692 = vsub.s32 %v689, %v691
    %v693 = vrot.slane %v685, %v692
    %v695 = vunpack.c.l.s4 1983009808
    %v696 = vunpack.c.0.s8 %v695
    %v697 = vlaneseq
    %v698 = vshrl.u32 %v697, 7
    %v699 = vsub.s32 %v696, %v698
    %v700 = vrot.slane %v686, %v699
    %v701 = vcombine.low %v693, %v700
    %v702 = vcombine.low %v279, %v288
    %v703 = vcombine.low %v297, %v306
    %v705 = vunpack.c.l.s4 1983009808
    %v706 = vunpack.c.0.s8 %v705
    %v707 = vlaneseq
    %v708 = vshrl.u32 %v707, 7
    %v709 = vsub.s32 %v706, %v708
    %v710 = vrot.slane %v702, %v709
    %v712 = vunpack.c.l.s4 1983009808
    %v713 = vunpack.c.0.s8 %v712
    %v714 = vlaneseq
    %v715 = vshrl.u32 %v714, 7
    %v716 = vsub.s32 %v713, %v715
    %v717 = vrot.slane %v703, %v716
    %v718 = vcombine.low %v710, %v717
    %v719 = vcombine.low %v315, %v324
    %v720 = vcombine.low %v333, %v342
    %v722 = vunpack.c.l.s4 1983009808
    %v723 = vunpack.c.0.s8 %v722
    %v724 = vlaneseq
    %v725 = vshrl.u32 %v724, 7
    %v726 = vsub.s32 %v723, %v725
    %v727 = vrot.slane %v719, %v726
    %v729 = vunpack.c.l.s4 1983009808
    %v730 = vunpack.c.0.s8 %v729
    %v731 = vlaneseq
    %v732 = vshrl.u32 %v731, 7
    %v733 = vsub.s32 %v730, %v732
    %v734 = vrot.slane %v720, %v733
    %v735 = vcombine.low %v727, %v734
    %v736 = vcombine.low %v351, %v360
    %v737 = vcombine.low %v369, %v378
    %v739 = vunpack.c.l.s4 1983009808
    %v740 = vunpack.c.0.s8 %v739
    %v741 = vlaneseq
    %v742 = vshrl.u32 %v741, 7
    %v743 = vsub.s32 %v740, %v742
    %v744 = vrot.slane %v736, %v743
    %v746 = vunpack.c.l.s4 1983009808
    %v747 = vunpack.c.0.s8 %v746
    %v748 = vlaneseq
    %v749 = vshrl.u32 %v748, 7
    %v750 = vsub.s32 %v747, %v749
    %v751 = vrot.slane %v737, %v750
    %v752 = vcombine.low %v744, %v751
    %v753 = vcombine.low %v387, %v396
    %v754 = vcombine.low %v405, %v414
    %v756 = vunpack.c.l.s4 1983009808
    %v757 = vunpack.c.0.s8 %v756
    %v758 = vlaneseq
    %v759 = vshrl.u32 %v758, 7
    %v760 = vsub.s32 %v757, %v759
    %v761 = vrot.slane %v753, %v760
    %v763 = vunpack.c.l.s4 1983009808
    %v764 = vunpack.c.0.s8 %v763
    %v765 = vlaneseq
    %v766 = vshrl.u32 %v765, 7
    %v767 = vsub.s32 %v764, %v766
    %v768 = vrot.slane %v754, %v767
    %v769 = vcombine.low %v761, %v768
    %v770 = vcombine.low %v423, %v432
    %v771 = vcombine.low %v441, %v450
    %v773 = vunpack.c.l.s4 1983009808
    %v774 = vunpack.c.0.s8 %v773
    %v775 = vlaneseq
    %v776 = vshrl.u32 %v775, 7
    %v777 = vsub.s32 %v774, %v776
    %v778 = vrot.slane %v770, %v777
    %v780 = vunpack.c.l.s4 1983009808
    %v781 = vunpack.c.0.s8 %v780
    %v782 = vlaneseq
    %v783 = vshrl.u32 %v782, 7
    %v784 = vsub.s32 %v781, %v783
    %v785 = vrot.slane %v771, %v784
    %v786 = vcombine.low %v778, %v785
    %vm803 = vcmask 130048
    %v804 = vsel %vm803, %v531, 0.0
    %805 = vadd.xlane.f32.xlu0 %v804
    %v806 = vpop.xlane.xlu0 %805
    %v807 = vsel %vm803, %v548, 0.0
    %808 = vadd.xlane.f32.xlu0 %v807
    %v809 = vpop.xlane.xlu0 %808
    %v810 = vsel %vm803, %v565, 0.0
    %811 = vadd.xlane.f32.xlu0 %v810
    %v812 = vpop.xlane.xlu0 %811
    %v813 = vsel %vm803, %v582, 0.0
    %814 = vadd.xlane.f32.xlu0 %v813
    %v815 = vpop.xlane.xlu0 %814
    %v816 = vsel %vm803, %v599, 0.0
    %817 = vadd.xlane.f32.xlu0 %v816
    %v818 = vpop.xlane.xlu0 %817
    %v819 = vsel %vm803, %v616, 0.0
    %820 = vadd.xlane.f32.xlu0 %v819
    %v821 = vpop.xlane.xlu0 %820
    %v822 = vsel %vm803, %v633, 0.0
    %823 = vadd.xlane.f32.xlu0 %v822
    %v824 = vpop.xlane.xlu0 %823
    %v825 = vsel %vm803, %v650, 0.0
    %826 = vadd.xlane.f32.xlu0 %v825
    %v827 = vpop.xlane.xlu0 %826
    %v828 = vsel %vm803, %v667, 0.0
    %829 = vadd.xlane.f32.xlu0 %v828
    %v830 = vpop.xlane.xlu0 %829
    %v831 = vsel %vm803, %v684, 0.0
    %832 = vadd.xlane.f32.xlu0 %v831
    %v833 = vpop.xlane.xlu0 %832
    %v834 = vsel %vm803, %v701, 0.0
    %835 = vadd.xlane.f32.xlu0 %v834
    %v836 = vpop.xlane.xlu0 %835
    %v837 = vsel %vm803, %v718, 0.0
    %838 = vadd.xlane.f32.xlu0 %v837
    %v839 = vpop.xlane.xlu0 %838
    %v840 = vsel %vm803, %v735, 0.0
    %841 = vadd.xlane.f32.xlu0 %v840
    %v842 = vpop.xlane.xlu0 %841
    %v843 = vsel %vm803, %v752, 0.0
    %844 = vadd.xlane.f32.xlu0 %v843
    %v845 = vpop.xlane.xlu0 %844
    %v846 = vsel %vm803, %v769, 0.0
    %847 = vadd.xlane.f32.xlu0 %v846
    %v848 = vpop.xlane.xlu0 %847
    %v849 = vsel %vm803, %v786, 0.0
    %850 = vadd.xlane.f32.xlu0 %v849
    %v851 = vpop.xlane.xlu0 %850
    %v852 = vrcp.pop 16.0
    %v853 = vmul.f32 %v806, %v852
    %v854 = vmul.f32 %v809, %v852
    %v855 = vmul.f32 %v812, %v852
    %v856 = vmul.f32 %v815, %v852
    %v857 = vmul.f32 %v818, %v852
    %v858 = vmul.f32 %v821, %v852
    %v859 = vmul.f32 %v824, %v852
    %v860 = vmul.f32 %v827, %v852
    %v861 = vmul.f32 %v830, %v852
    %v862 = vmul.f32 %v833, %v852
    %v863 = vmul.f32 %v836, %v852
    %v864 = vmul.f32 %v839, %v852
    %v865 = vmul.f32 %v842, %v852
    %v866 = vmul.f32 %v845, %v852
    %v867 = vmul.f32 %v848, %v852
    %v868 = vmul.f32 %v851, %v852
    %v869 = vsel %vm803, %v531, -inf
    %870 = vmax.xlane.f32.xlu0 %v869
    %v871 = vpop.xlane.xlu0 %870
    %v872 = vsel %vm803, %v548, -inf
    %873 = vmax.xlane.f32.xlu0 %v872
    %v874 = vpop.xlane.xlu0 %873
    %v875 = vsel %vm803, %v565, -inf
    %876 = vmax.xlane.f32.xlu0 %v875
    %v877 = vpop.xlane.xlu0 %876
    %v878 = vsel %vm803, %v582, -inf
    %879 = vmax.xlane.f32.xlu0 %v878
    %v880 = vpop.xlane.xlu0 %879
    %v881 = vsel %vm803, %v599, -inf
    %882 = vmax.xlane.f32.xlu0 %v881
    %v883 = vpop.xlane.xlu0 %882
    %v884 = vsel %vm803, %v616, -inf
    %885 = vmax.xlane.f32.xlu0 %v884
    %v886 = vpop.xlane.xlu0 %885
    %v887 = vsel %vm803, %v633, -inf
    %888 = vmax.xlane.f32.xlu0 %v887
    %v889 = vpop.xlane.xlu0 %888
    %v890 = vsel %vm803, %v650, -inf
    %891 = vmax.xlane.f32.xlu0 %v890
    %v892 = vpop.xlane.xlu0 %891
    %v893 = vsel %vm803, %v667, -inf
    %894 = vmax.xlane.f32.xlu0 %v893
    %v895 = vpop.xlane.xlu0 %894
    %v896 = vsel %vm803, %v684, -inf
    %897 = vmax.xlane.f32.xlu0 %v896
    %v898 = vpop.xlane.xlu0 %897
    %v899 = vsel %vm803, %v701, -inf
    %900 = vmax.xlane.f32.xlu0 %v899
    %v901 = vpop.xlane.xlu0 %900
    %v902 = vsel %vm803, %v718, -inf
    %903 = vmax.xlane.f32.xlu0 %v902
    %v904 = vpop.xlane.xlu0 %903
    %v905 = vsel %vm803, %v735, -inf
    %906 = vmax.xlane.f32.xlu0 %v905
    %v907 = vpop.xlane.xlu0 %906
    %v908 = vsel %vm803, %v752, -inf
    %909 = vmax.xlane.f32.xlu0 %v908
    %v910 = vpop.xlane.xlu0 %909
    %v911 = vsel %vm803, %v769, -inf
    %912 = vmax.xlane.f32.xlu0 %v911
    %v913 = vpop.xlane.xlu0 %912
    %v914 = vsel %vm803, %v786, -inf
    %915 = vmax.xlane.f32.xlu0 %v914
    %v916 = vpop.xlane.xlu0 %915
    %v917 = vld [vmem:[%s1] sm:$0xff]
    %v918 = vld [vmem:[%s1 + $0x8] sm:$0xff]
    %v919 = vld [vmem:[%s1 + $0x10] sm:$0xff]
    %v920 = vld [vmem:[%s1 + $0x18] sm:$0xff]
    %v921 = vld [vmem:[%s1 + $0x20] sm:$0xff]
    %v922 = vld [vmem:[%s1 + $0x28] sm:$0xff]
    %v923 = vld [vmem:[%s1 + $0x30] sm:$0xff]
    %v924 = vld [vmem:[%s1 + $0x38] sm:$0xff]
    %v925 = vld [vmem:[%s2] sm:$0x1]
    %v926 = vld [vmem:[%s3] sm:$0xf]
    %v927 = vld [vmem:[%s4] sm:$0x1]
    %v929 = vlaneseq
    %v930 = vshrl.u32 %v929, 7
    %v931 = vsub.s32 0, %v930
    %v932 = vrot.slane %v925, %v931
    %v950 = vlaneseq
    %v951 = vand.u32 %v950, 127
    %v952 = vlaneseq
    %v953 = vshrl.u32 %v952, 7
    %v954 = vsub.s32 %v951, %v953
    %v955 = vrot.slane %v853, %v954
    %v956 = vadd.s32 %v951, 4294967288
    %v957 = vlaneseq
    %v958 = vshrl.u32 %v957, 7
    %v959 = vsub.s32 %v956, %v958
    %v960 = vrot.slane %v854, %v959
    %vm961 = vcmask 130112
    %v962 = vsel %vm961, %v960, %v955
    %v963 = vadd.s32 %v951, 4294967280
    %v964 = vlaneseq
    %v965 = vshrl.u32 %v964, 7
    %v966 = vsub.s32 %v963, %v965
    %v967 = vrot.slane %v855, %v966
    %vm968 = vcmask 195712
    %v969 = vsel %vm968, %v967, %v962
    %v970 = vadd.s32 %v951, 4294967272
    %v971 = vlaneseq
    %v972 = vshrl.u32 %v971, 7
    %v973 = vsub.s32 %v970, %v972
    %v974 = vrot.slane %v856, %v973
    %vm975 = vcmask 261312
    %v976 = vsel %vm975, %v974, %v969
    %v977 = vadd.s32 %v951, 4294967264
    %v978 = vlaneseq
    %v979 = vshrl.u32 %v978, 7
    %v980 = vsub.s32 %v977, %v979
    %v981 = vrot.slane %v857, %v980
    %vm982 = vcmask 326912
    %v983 = vsel %vm982, %v981, %v976
    %v984 = vadd.s32 %v951, 4294967256
    %v985 = vlaneseq
    %v986 = vshrl.u32 %v985, 7
    %v987 = vsub.s32 %v984, %v986
    %v988 = vrot.slane %v858, %v987
    %vm989 = vcmask 392512
    %v990 = vsel %vm989, %v988, %v983
    %v991 = vadd.s32 %v951, 4294967248
    %v992 = vlaneseq
    %v993 = vshrl.u32 %v992, 7
    %v994 = vsub.s32 %v991, %v993
    %v995 = vrot.slane %v859, %v994
    %vm996 = vcmask 458112
    %v997 = vsel %vm996, %v995, %v990
    %v998 = vadd.s32 %v951, 4294967240
    %v999 = vlaneseq
    %v1000 = vshrl.u32 %v999, 7
    %v1001 = vsub.s32 %v998, %v1000
    %v1002 = vrot.slane %v860, %v1001
    %vm1003 = vcmask 523712
    %v1004 = vsel %vm1003, %v1002, %v997
    %v1005 = vlaneseq
    %v1006 = vshrl.u32 %v1005, 7
    %v1007 = vsub.s32 %v951, %v1006
    %v1008 = vrot.slane %v861, %v1007
    %v1009 = vlaneseq
    %v1010 = vshrl.u32 %v1009, 7
    %v1011 = vsub.s32 %v956, %v1010
    %v1012 = vrot.slane %v862, %v1011
    %v1013 = vsel %vm961, %v1012, %v1008
    %v1014 = vlaneseq
    %v1015 = vshrl.u32 %v1014, 7
    %v1016 = vsub.s32 %v963, %v1015
    %v1017 = vrot.slane %v863, %v1016
    %v1018 = vsel %vm968, %v1017, %v1013
    %v1019 = vlaneseq
    %v1020 = vshrl.u32 %v1019, 7
    %v1021 = vsub.s32 %v970, %v1020
    %v1022 = vrot.slane %v864, %v1021
    %v1023 = vsel %vm975, %v1022, %v1018
    %v1024 = vlaneseq
    %v1025 = vshrl.u32 %v1024, 7
    %v1026 = vsub.s32 %v977, %v1025
    %v1027 = vrot.slane %v865, %v1026
    %v1028 = vsel %vm982, %v1027, %v1023
    %v1029 = vlaneseq
    %v1030 = vshrl.u32 %v1029, 7
    %v1031 = vsub.s32 %v984, %v1030
    %v1032 = vrot.slane %v866, %v1031
    %v1033 = vsel %vm989, %v1032, %v1028
    %v1034 = vlaneseq
    %v1035 = vshrl.u32 %v1034, 7
    %v1036 = vsub.s32 %v991, %v1035
    %v1037 = vrot.slane %v867, %v1036
    %v1038 = vsel %vm996, %v1037, %v1033
    %v1039 = vlaneseq
    %v1040 = vshrl.u32 %v1039, 7
    %v1041 = vsub.s32 %v998, %v1040
    %v1042 = vrot.slane %v868, %v1041
    %v1043 = vsel %vm1003, %v1042, %v1038
    %vm1044 = vcmask 1041409
    %v1045 = vsel %vm1044, %v1043, %v1004
    %vm1046 = vcmask 523264
    %v1047 = vsel %vm1046, %v1045, 0
    %1049 = vmatprep.subr.mxu0 0.0
    %1050 = vmatpush1.msra.mxu0 %v917
    %1051 = vmatprep.subr.mxu0 0.0
    %1052 = vmatpush1.msra.mxu0 %v918
    %1053 = vmatprep.subr.mxu0 0.0
    %1054 = vmatpush1.msra.mxu0 %v919
    %1055 = vmatprep.subr.mxu0 0.0
    %1056 = vmatpush1.msra.mxu0 %v920
    %1057 = vmatprep.subr.mxu0 0.0
    %1058 = vmatpush1.msra.mxu0 %v921
    %1059 = vmatprep.subr.mxu0 0.0
    %1060 = vmatpush1.msra.mxu0 %v922
    %1061 = vmatprep.subr.mxu0 0.0
    %1062 = vmatpush1.msra.mxu0 %v923
    %1063 = vmatprep.subr.mxu0 0.0
    %1064 = vmatpush1.msra.mxu0 %v924
    %1065 = vmatprep.subr.mxu0 0.0
    %1066 = vmatpush1.msra.mxu0 0.0
    %1067 = vmatprep.subr.mxu0 0.0
    %1068 = vmatpush1.msra.mxu0 0.0
    %1069 = vmatprep.subr.mxu0 0.0
    %1070 = vmatpush1.msra.mxu0 0.0
    %1071 = vmatprep.subr.mxu0 0.0
    %1072 = vmatpush1.msra.mxu0 0.0
    %1073 = vmatprep.subr.mxu0 0.0
    %1074 = vmatpush1.msra.mxu0 0.0
    %1075 = vmatprep.subr.mxu0 0.0
    %1076 = vmatpush1.msra.mxu0 0.0
    %1077 = vmatprep.subr.mxu0 0.0
    %1078 = vmatpush1.msra.mxu0 0.0
    %1079 = vmatprep.subr.mxu0 0.0
    %1080 = vmatpush1.msra.mxu0 0.0
    %1081 = vmatprep.subr.mxu0 0.0
    %1082 = vmatpush1.msra.mxu0 0.0
    %1083 = vmatprep.subr.mxu0 0.0
    %1084 = vmatpush1.msra.mxu0 0.0
    %1085 = vmatprep.subr.mxu0 0.0
    %1086 = vmatpush1.msra.mxu0 0.0
    %1087 = vmatprep.subr.mxu0 0.0
    %1088 = vmatpush1.msra.mxu0 0.0
    %1089 = vmatprep.subr.mxu0 0.0
    %1090 = vmatpush1.msra.mxu0 0.0
    %1091 = vmatprep.subr.mxu0 0.0
    %1092 = vmatpush1.msra.mxu0 0.0
    %1093 = vmatprep.subr.mxu0 0.0
    %1094 = vmatpush1.msra.mxu0 0.0
    %1095 = vmatprep.subr.mxu0 0.0
    %1096 = vmatpush1.msra.mxu0 0.0
    %1097 = vmatprep.subr.mxu0 0.0
    %1098 = vmatpush1.msra.mxu0 0.0
    %1099 = vmatprep.subr.mxu0 0.0
    %1100 = vmatpush1.msra.mxu0 0.0
    %1101 = vmatprep.subr.mxu0 0.0
    %1102 = vmatpush1.msra.mxu0 0.0
    %1103 = vmatprep.subr.mxu0 0.0
    %1104 = vmatpush1.msra.mxu0 0.0
    %1105 = vmatprep.subr.mxu0 0.0
    %1106 = vmatpush1.msra.mxu0 0.0
    %1107 = vmatprep.subr.mxu0 0.0
    %1108 = vmatpush1.msra.mxu0 0.0
    %1109 = vmatprep.subr.mxu0 0.0
    %1110 = vmatpush1.msra.mxu0 0.0
    %1111 = vmatprep.subr.mxu0 0.0
    %1112 = vmatpush1.msra.mxu0 0.0
    %1113 = vmatprep.mubr.f32.mxu0 0.0
    %1114 = vmatmul.mubr.f32.gmra.mrb[0].mxu0 %v1047
    %v1115 = vpop.f32.mrb[0].mxu0
    %v1116 = vadd.f32 %v932, %v1115
    %v1117 = vpop.f32.mrb[0].mxu0
    %1118 = vdwg.mxu0
    %v1119 = vmax.f32 %v1116, 0.0
    %v1121 = vlaneseq
    %v1122 = vshrl.u32 %v1121, 7
    %v1123 = vsub.s32 0, %v1122
    %v1124 = vrot.slane %v927, %v1123
    %vm1126 = vcmask 31744
    %v1128 = vsel %vm1126, %v1119, 0
    %vm1130 = vcmask 1043456
    %v1132 = vsel %vm1130, %v926, 0
    %1134 = vmatprep.subr.mxu0 0.0
    %1135 = vmatpush1.msra.mxu0 %v1132
    %1136 = vmatprep.subr.mxu0 0.0
    %1137 = vmatpush1.msra.mxu0 0.0
    %1138 = vmatprep.subr.mxu0 0.0
    %1139 = vmatpush1.msra.mxu0 0.0
    %1140 = vmatprep.subr.mxu0 0.0
    %1141 = vmatpush1.msra.mxu0 0.0
    %1142 = vmatprep.subr.mxu0 0.0
    %1143 = vmatpush1.msra.mxu0 0.0
    %1144 = vmatprep.subr.mxu0 0.0
    %1145 = vmatpush1.msra.mxu0 0.0
    %1146 = vmatprep.subr.mxu0 0.0
    %1147 = vmatpush1.msra.mxu0 0.0
    %1148 = vmatprep.subr.mxu0 0.0
    %1149 = vmatpush1.msra.mxu0 0.0
    %1150 = vmatprep.subr.mxu0 0.0
    %1151 = vmatpush1.msra.mxu0 0.0
    %1152 = vmatprep.subr.mxu0 0.0
    %1153 = vmatpush1.msra.mxu0 0.0
    %1154 = vmatprep.subr.mxu0 0.0
    %1155 = vmatpush1.msra.mxu0 0.0
    %1156 = vmatprep.subr.mxu0 0.0
    %1157 = vmatpush1.msra.mxu0 0.0
    %1158 = vmatprep.subr.mxu0 0.0
    %1159 = vmatpush1.msra.mxu0 0.0
    %1160 = vmatprep.subr.mxu0 0.0
    %1161 = vmatpush1.msra.mxu0 0.0
    %1162 = vmatprep.subr.mxu0 0.0
    %1163 = vmatpush1.msra.mxu0 0.0
    %1164 = vmatprep.subr.mxu0 0.0
    %1165 = vmatpush1.msra.mxu0 0.0
    %1166 = vmatprep.subr.mxu0 0.0
    %1167 = vmatpush1.msra.mxu0 0.0
    %1168 = vmatprep.subr.mxu0 0.0
    %1169 = vmatpush1.msra.mxu0 0.0
    %1170 = vmatprep.subr.mxu0 0.0
    %1171 = vmatpush1.msra.mxu0 0.0
    %1172 = vmatprep.subr.mxu0 0.0
    %1173 = vmatpush1.msra.mxu0 0.0
    %1174 = vmatprep.subr.mxu0 0.0
    %1175 = vmatpush1.msra.mxu0 0.0
    %1176 = vmatprep.subr.mxu0 0.0
    %1177 = vmatpush1.msra.mxu0 0.0
    %1178 = vmatprep.subr.mxu0 0.0
    %1179 = vmatpush1.msra.mxu0 0.0
    %1180 = vmatprep.subr.mxu0 0.0
    %1181 = vmatpush1.msra.mxu0 0.0
    %1182 = vmatprep.subr.mxu0 0.0
    %1183 = vmatpush1.msra.mxu0 0.0
    %1184 = vmatprep.subr.mxu0 0.0
    %1185 = vmatpush1.msra.mxu0 0.0
    %1186 = vmatprep.subr.mxu0 0.0
    %1187 = vmatpush1.msra.mxu0 0.0
    %1188 = vmatprep.subr.mxu0 0.0
    %1189 = vmatpush1.msra.mxu0 0.0
    %1190 = vmatprep.subr.mxu0 0.0
    %1191 = vmatpush1.msra.mxu0 0.0
    %1192 = vmatprep.subr.mxu0 0.0
    %1193 = vmatpush1.msra.mxu0 0.0
    %1194 = vmatprep.subr.mxu0 0.0
    %1195 = vmatpush1.msra.mxu0 0.0
    %1196 = vmatprep.subr.mxu0 0.0
    %1197 = vmatpush1.msra.mxu0 0.0
    %1198 = vmatprep.mubr.f32.mxu0 0.0
    %1199 = vmatmul.mubr.f32.gmra.mrb[0].mxu0 %v1128
    %v1200 = vpop.f32.mrb[0].mxu0
    %v1201 = vadd.f32 %v1124, %v1200
    %v1202 = vpop.f32.mrb[0].mxu0
    %1203 = vdwg.mxu0
    %v1220 = vlaneseq
    %v1221 = vshrl.u32 %v1220, 7
    %v1222 = vsub.s32 %v951, %v1221
    %v1223 = vrot.slane %v871, %v1222
    %v1224 = vlaneseq
    %v1225 = vshrl.u32 %v1224, 7
    %v1226 = vsub.s32 %v956, %v1225
    %v1227 = vrot.slane %v874, %v1226
    %v1228 = vsel %vm961, %v1227, %v1223
    %v1229 = vlaneseq
    %v1230 = vshrl.u32 %v1229, 7
    %v1231 = vsub.s32 %v963, %v1230
    %v1232 = vrot.slane %v877, %v1231
    %v1233 = vsel %vm968, %v1232, %v1228
    %v1234 = vlaneseq
    %v1235 = vshrl.u32 %v1234, 7
    %v1236 = vsub.s32 %v970, %v1235
    %v1237 = vrot.slane %v880, %v1236
    %v1238 = vsel %vm975, %v1237, %v1233
    %v1239 = vlaneseq
    %v1240 = vshrl.u32 %v1239, 7
    %v1241 = vsub.s32 %v977, %v1240
    %v1242 = vrot.slane %v883, %v1241
    %v1243 = vsel %vm982, %v1242, %v1238
    %v1244 = vlaneseq
    %v1245 = vshrl.u32 %v1244, 7
    %v1246 = vsub.s32 %v984, %v1245
    %v1247 = vrot.slane %v886, %v1246
    %v1248 = vsel %vm989, %v1247, %v1243
    %v1249 = vlaneseq
    %v1250 = vshrl.u32 %v1249, 7
    %v1251 = vsub.s32 %v991, %v1250
    %v1252 = vrot.slane %v889, %v1251
    %v1253 = vsel %vm996, %v1252, %v1248
    %v1254 = vlaneseq
    %v1255 = vshrl.u32 %v1254, 7
    %v1256 = vsub.s32 %v998, %v1255
    %v1257 = vrot.slane %v892, %v1256
    %v1258 = vsel %vm1003, %v1257, %v1253
    %v1259 = vlaneseq
    %v1260 = vshrl.u32 %v1259, 7
    %v1261 = vsub.s32 %v951, %v1260
    %v1262 = vrot.slane %v895, %v1261
    %v1263 = vlaneseq
    %v1264 = vshrl.u32 %v1263, 7
    %v1265 = vsub.s32 %v956, %v1264
    %v1266 = vrot.slane %v898, %v1265
    %v1267 = vsel %vm961, %v1266, %v1262
    %v1268 = vlaneseq
    %v1269 = vshrl.u32 %v1268, 7
    %v1270 = vsub.s32 %v963, %v1269
    %v1271 = vrot.slane %v901, %v1270
    %v1272 = vsel %vm968, %v1271, %v1267
    %v1273 = vlaneseq
    %v1274 = vshrl.u32 %v1273, 7
    %v1275 = vsub.s32 %v970, %v1274
    %v1276 = vrot.slane %v904, %v1275
    %v1277 = vsel %vm975, %v1276, %v1272
    %v1278 = vlaneseq
    %v1279 = vshrl.u32 %v1278, 7
    %v1280 = vsub.s32 %v977, %v1279
    %v1281 = vrot.slane %v907, %v1280
    %v1282 = vsel %vm982, %v1281, %v1277
    %v1283 = vlaneseq
    %v1284 = vshrl.u32 %v1283, 7
    %v1285 = vsub.s32 %v984, %v1284
    %v1286 = vrot.slane %v910, %v1285
    %v1287 = vsel %vm989, %v1286, %v1282
    %v1288 = vlaneseq
    %v1289 = vshrl.u32 %v1288, 7
    %v1290 = vsub.s32 %v991, %v1289
    %v1291 = vrot.slane %v913, %v1290
    %v1292 = vsel %vm996, %v1291, %v1287
    %v1293 = vlaneseq
    %v1294 = vshrl.u32 %v1293, 7
    %v1295 = vsub.s32 %v998, %v1294
    %v1296 = vrot.slane %v916, %v1295
    %v1297 = vsel %vm1003, %v1296, %v1292
    %v1298 = vsel %vm1044, %v1297, %v1258
    %v1299 = vsel %vm1046, %v1298, 0
    %1301 = vmatprep.subr.mxu0 0.0
    %1302 = vmatpush1.msra.mxu0 %v917
    %1303 = vmatprep.subr.mxu0 0.0
    %1304 = vmatpush1.msra.mxu0 %v918
    %1305 = vmatprep.subr.mxu0 0.0
    %1306 = vmatpush1.msra.mxu0 %v919
    %1307 = vmatprep.subr.mxu0 0.0
    %1308 = vmatpush1.msra.mxu0 %v920
    %1309 = vmatprep.subr.mxu0 0.0
    %1310 = vmatpush1.msra.mxu0 %v921
    %1311 = vmatprep.subr.mxu0 0.0
    %1312 = vmatpush1.msra.mxu0 %v922
    %1313 = vmatprep.subr.mxu0 0.0
    %1314 = vmatpush1.msra.mxu0 %v923
    %1315 = vmatprep.subr.mxu0 0.0
    %1316 = vmatpush1.msra.mxu0 %v924
    %1317 = vmatprep.subr.mxu0 0.0
    %1318 = vmatpush1.msra.mxu0 0.0
    %1319 = vmatprep.subr.mxu0 0.0
    %1320 = vmatpush1.msra.mxu0 0.0
    %1321 = vmatprep.subr.mxu0 0.0
    %1322 = vmatpush1.msra.mxu0 0.0
    %1323 = vmatprep.subr.mxu0 0.0
    %1324 = vmatpush1.msra.mxu0 0.0
    %1325 = vmatprep.subr.mxu0 0.0
    %1326 = vmatpush1.msra.mxu0 0.0
    %1327 = vmatprep.subr.mxu0 0.0
    %1328 = vmatpush1.msra.mxu0 0.0
    %1329 = vmatprep.subr.mxu0 0.0
    %1330 = vmatpush1.msra.mxu0 0.0
    %1331 = vmatprep.subr.mxu0 0.0
    %1332 = vmatpush1.msra.mxu0 0.0
    %1333 = vmatprep.subr.mxu0 0.0
    %1334 = vmatpush1.msra.mxu0 0.0
    %1335 = vmatprep.subr.mxu0 0.0
    %1336 = vmatpush1.msra.mxu0 0.0
    %1337 = vmatprep.subr.mxu0 0.0
    %1338 = vmatpush1.msra.mxu0 0.0
    %1339 = vmatprep.subr.mxu0 0.0
    %1340 = vmatpush1.msra.mxu0 0.0
    %1341 = vmatprep.subr.mxu0 0.0
    %1342 = vmatpush1.msra.mxu0 0.0
    %1343 = vmatprep.subr.mxu0 0.0
    %1344 = vmatpush1.msra.mxu0 0.0
    %1345 = vmatprep.subr.mxu0 0.0
    %1346 = vmatpush1.msra.mxu0 0.0
    %1347 = vmatprep.subr.mxu0 0.0
    %1348 = vmatpush1.msra.mxu0 0.0
    %1349 = vmatprep.subr.mxu0 0.0
    %1350 = vmatpush1.msra.mxu0 0.0
    %1351 = vmatprep.subr.mxu0 0.0
    %1352 = vmatpush1.msra.mxu0 0.0
    %1353 = vmatprep.subr.mxu0 0.0
    %1354 = vmatpush1.msra.mxu0 0.0
    %1355 = vmatprep.subr.mxu0 0.0
    %1356 = vmatpush1.msra.mxu0 0.0
    %1357 = vmatprep.subr.mxu0 0.0
    %1358 = vmatpush1.msra.mxu0 0.0
    %1359 = vmatprep.subr.mxu0 0.0
    %1360 = vmatpush1.msra.mxu0 0.0
    %1361 = vmatprep.subr.mxu0 0.0
    %1362 = vmatpush1.msra.mxu0 0.0
    %1363 = vmatprep.subr.mxu0 0.0
    %1364 = vmatpush1.msra.mxu0 0.0
    %1365 = vmatprep.mubr.f32.mxu0 0.0
    %1366 = vmatmul.mubr.f32.gmra.mrb[0].mxu0 %v1299
    %v1367 = vpop.f32.mrb[0].mxu0
    %v1368 = vadd.f32 %v932, %v1367
    %v1369 = vpop.f32.mrb[0].mxu0
    %1370 = vdwg.mxu0
    %v1371 = vmax.f32 %v1368, 0.0
    %v1373 = vsel %vm1126, %v1371, 0
    %1375 = vmatprep.subr.mxu0 0.0
    %1376 = vmatpush1.msra.mxu0 %v1132
    %1377 = vmatprep.subr.mxu0 0.0
    %1378 = vmatpush1.msra.mxu0 0.0
    %1379 = vmatprep.subr.mxu0 0.0
    %1380 = vmatpush1.msra.mxu0 0.0
    %1381 = vmatprep.subr.mxu0 0.0
    %1382 = vmatpush1.msra.mxu0 0.0
    %1383 = vmatprep.subr.mxu0 0.0
    %1384 = vmatpush1.msra.mxu0 0.0
    %1385 = vmatprep.subr.mxu0 0.0
    %1386 = vmatpush1.msra.mxu0 0.0
    %1387 = vmatprep.subr.mxu0 0.0
    %1388 = vmatpush1.msra.mxu0 0.0
    %1389 = vmatprep.subr.mxu0 0.0
    %1390 = vmatpush1.msra.mxu0 0.0
    %1391 = vmatprep.subr.mxu0 0.0
    %1392 = vmatpush1.msra.mxu0 0.0
    %1393 = vmatprep.subr.mxu0 0.0
    %1394 = vmatpush1.msra.mxu0 0.0
    %1395 = vmatprep.subr.mxu0 0.0
    %1396 = vmatpush1.msra.mxu0 0.0
    %1397 = vmatprep.subr.mxu0 0.0
    %1398 = vmatpush1.msra.mxu0 0.0
    %1399 = vmatprep.subr.mxu0 0.0
    %1400 = vmatpush1.msra.mxu0 0.0
    %1401 = vmatprep.subr.mxu0 0.0
    %1402 = vmatpush1.msra.mxu0 0.0
    %1403 = vmatprep.subr.mxu0 0.0
    %1404 = vmatpush1.msra.mxu0 0.0
    %1405 = vmatprep.subr.mxu0 0.0
    %1406 = vmatpush1.msra.mxu0 0.0
    %1407 = vmatprep.subr.mxu0 0.0
    %1408 = vmatpush1.msra.mxu0 0.0
    %1409 = vmatprep.subr.mxu0 0.0
    %1410 = vmatpush1.msra.mxu0 0.0
    %1411 = vmatprep.subr.mxu0 0.0
    %1412 = vmatpush1.msra.mxu0 0.0
    %1413 = vmatprep.subr.mxu0 0.0
    %1414 = vmatpush1.msra.mxu0 0.0
    %1415 = vmatprep.subr.mxu0 0.0
    %1416 = vmatpush1.msra.mxu0 0.0
    %1417 = vmatprep.subr.mxu0 0.0
    %1418 = vmatpush1.msra.mxu0 0.0
    %1419 = vmatprep.subr.mxu0 0.0
    %1420 = vmatpush1.msra.mxu0 0.0
    %1421 = vmatprep.subr.mxu0 0.0
    %1422 = vmatpush1.msra.mxu0 0.0
    %1423 = vmatprep.subr.mxu0 0.0
    %1424 = vmatpush1.msra.mxu0 0.0
    %1425 = vmatprep.subr.mxu0 0.0
    %1426 = vmatpush1.msra.mxu0 0.0
    %1427 = vmatprep.subr.mxu0 0.0
    %1428 = vmatpush1.msra.mxu0 0.0
    %1429 = vmatprep.subr.mxu0 0.0
    %1430 = vmatpush1.msra.mxu0 0.0
    %1431 = vmatprep.subr.mxu0 0.0
    %1432 = vmatpush1.msra.mxu0 0.0
    %1433 = vmatprep.subr.mxu0 0.0
    %1434 = vmatpush1.msra.mxu0 0.0
    %1435 = vmatprep.subr.mxu0 0.0
    %1436 = vmatpush1.msra.mxu0 0.0
    %1437 = vmatprep.subr.mxu0 0.0
    %1438 = vmatpush1.msra.mxu0 0.0
    %1439 = vmatprep.mubr.f32.mxu0 0.0
    %1440 = vmatmul.mubr.f32.gmra.mrb[0].mxu0 %v1373
    %v1441 = vpop.f32.mrb[0].mxu0
    %v1442 = vadd.f32 %v1124, %v1441
    %v1443 = vpop.f32.mrb[0].mxu0
    %1444 = vdwg.mxu0
    %v1445 = vadd.f32 %v1201, %v1442
    %v1446 = vxor.u32 %v1445, 2147483648
    %v1447 = vmul.f32 %v1446, 1.442695
    %v1448 = vpow.pop %v1447
    %v1449 = vadd.f32 %v1448, 1.0
    %v1450 = vrcp.pop %v1449
    %v1451 = vmul.f32 1.0, %v1450
    %v1452 = vlaneseq
    %v1453 = vshrl.u32 %v1452, 7
    %v1454 = vsub.s32 0, %v1453
    %v1455 = vrot.slane %v1451, %v1454
    %1457 = vbcast.lane.b32.xlu0 %v1455, 256
    %v1458 = vpop.permute.xlu0 %1457
    %s1460 = sor.u32 256, 8
    %1461 = vbcast.lane.b32.xlu0 %v1455, %s1460
    %v1462 = vpop.permute.xlu0 %1461
    %s1464 = sor.u32 256, 16
    %1465 = vbcast.lane.b32.xlu0 %v1455, %s1464
    %v1466 = vpop.permute.xlu0 %1465
    %s1468 = sor.u32 256, 24
    %1469 = vbcast.lane.b32.xlu0 %v1455, %s1468
    %v1470 = vpop.permute.xlu0 %1469
    %s1472 = sor.u32 256, 32
    %1473 = vbcast.lane.b32.xlu0 %v1455, %s1472
    %v1474 = vpop.permute.xlu0 %1473
    %s1476 = sor.u32 256, 40
    %1477 = vbcast.lane.b32.xlu0 %v1455, %s1476
    %v1478 = vpop.permute.xlu0 %1477
    %s1480 = sor.u32 256, 48
    %1481 = vbcast.lane.b32.xlu0 %v1455, %s1480
    %v1482 = vpop.permute.xlu0 %1481
    %s1484 = sor.u32 256, 56
    %1485 = vbcast.lane.b32.xlu0 %v1455, %s1484
    %v1486 = vpop.permute.xlu0 %1485
    %v1487 = vlaneseq
    %v1488 = vshrl.u32 %v1487, 7
    %v1489 = vsub.s32 1, %v1488
    %v1490 = vrot.slane %v1451, %v1489
    %1492 = vbcast.lane.b32.xlu0 %v1490, 256
    %v1493 = vpop.permute.xlu0 %1492
    %s1495 = sor.u32 256, 8
    %1496 = vbcast.lane.b32.xlu0 %v1490, %s1495
    %v1497 = vpop.permute.xlu0 %1496
    %s1499 = sor.u32 256, 16
    %1500 = vbcast.lane.b32.xlu0 %v1490, %s1499
    %v1501 = vpop.permute.xlu0 %1500
    %s1503 = sor.u32 256, 24
    %1504 = vbcast.lane.b32.xlu0 %v1490, %s1503
    %v1505 = vpop.permute.xlu0 %1504
    %s1507 = sor.u32 256, 32
    %1508 = vbcast.lane.b32.xlu0 %v1490, %s1507
    %v1509 = vpop.permute.xlu0 %1508
    %s1511 = sor.u32 256, 40
    %1512 = vbcast.lane.b32.xlu0 %v1490, %s1511
    %v1513 = vpop.permute.xlu0 %1512
    %s1515 = sor.u32 256, 48
    %1516 = vbcast.lane.b32.xlu0 %v1490, %s1515
    %v1517 = vpop.permute.xlu0 %1516
    %s1519 = sor.u32 256, 56
    %1520 = vbcast.lane.b32.xlu0 %v1490, %s1519
    %v1521 = vpop.permute.xlu0 %1520
    %v1522 = vmul.f32 %v1458, %v531
    %v1523 = vmul.f32 %v1462, %v548
    %v1524 = vmul.f32 %v1466, %v565
    %v1525 = vmul.f32 %v1470, %v582
    %v1526 = vmul.f32 %v1474, %v599
    %v1527 = vmul.f32 %v1478, %v616
    %v1528 = vmul.f32 %v1482, %v633
    %v1529 = vmul.f32 %v1486, %v650
    %v1530 = vmul.f32 %v1493, %v667
    %v1531 = vmul.f32 %v1497, %v684
    %v1532 = vmul.f32 %v1501, %v701
    %v1533 = vmul.f32 %v1505, %v718
    %v1534 = vmul.f32 %v1509, %v735
    %v1535 = vmul.f32 %v1513, %v752
    %v1536 = vmul.f32 %v1517, %v769
    %v1537 = vmul.f32 %v1521, %v786
    %v1538 = vcombine.high %v1522, 0.0
    %v1540 = vunpack.c.l.s4 1983009808
    %v1541 = vunpack.c.0.s8 %v1540
    %v1542 = vlaneseq
    %v1543 = vshrl.u32 %v1542, 7
    %v1544 = vsub.s32 %v1541, %v1543
    %v1545 = vrot.slane %v1522, %v1544
    %v1547 = vunpack.c.l.s4 1983009808
    %v1548 = vunpack.c.0.s8 %v1547
    %v1549 = vlaneseq
    %v1550 = vshrl.u32 %v1549, 7
    %v1551 = vsub.s32 %v1548, %v1550
    %v1552 = vrot.slane %v1538, %v1551
    %v1553 = vcombine.high %v1530, 0.0
    %v1555 = vunpack.c.l.s4 1983009808
    %v1556 = vunpack.c.0.s8 %v1555
    %v1557 = vlaneseq
    %v1558 = vshrl.u32 %v1557, 7
    %v1559 = vsub.s32 %v1556, %v1558
    %v1560 = vrot.slane %v1530, %v1559
    %v1562 = vunpack.c.l.s4 1983009808
    %v1563 = vunpack.c.0.s8 %v1562
    %v1564 = vlaneseq
    %v1565 = vshrl.u32 %v1564, 7
    %v1566 = vsub.s32 %v1563, %v1565
    %v1567 = vrot.slane %v1553, %v1566
    %v1568 = vcombine.low %v1545, %v1560
    %v1569 = vcombine.high %v1545, %v1560
    %v1571 = vunpack.c.l.s4 1934713408
    %v1572 = vunpack.c.0.s8 %v1571
    %v1573 = vlaneseq
    %v1574 = vshrl.u32 %v1573, 7
    %v1575 = vsub.s32 %v1572, %v1574
    %v1576 = vrot.slane %v1568, %v1575
    %v1578 = vunpack.c.l.s4 1934713408
    %v1579 = vunpack.c.0.s8 %v1578
    %v1580 = vlaneseq
    %v1581 = vshrl.u32 %v1580, 7
    %v1582 = vsub.s32 %v1579, %v1581
    %v1583 = vrot.slane %v1569, %v1582
    %v1584 = vcombine.low %v1552, %v1567
    %v1585 = vcombine.high %v1552, %v1567
    %v1587 = vunpack.c.l.s4 1934713408
    %v1588 = vunpack.c.0.s8 %v1587
    %v1589 = vlaneseq
    %v1590 = vshrl.u32 %v1589, 7
    %v1591 = vsub.s32 %v1588, %v1590
    %v1592 = vrot.slane %v1584, %v1591
    %v1594 = vunpack.c.l.s4 1934713408
    %v1595 = vunpack.c.0.s8 %v1594
    %v1596 = vlaneseq
    %v1597 = vshrl.u32 %v1596, 7
    %v1598 = vsub.s32 %v1595, %v1597
    %v1599 = vrot.slane %v1585, %v1598
    %v1600 = vcombine.high %v1576, 0.0
    %v1601 = vcombine.high %v1583, 0.0
    %v1602 = vcombine.high %v1592, 0.0
    %v1603 = vcombine.high %v1599, 0.0
    %v1604 = vcombine.high %v1523, 0.0
    %v1606 = vunpack.c.l.s4 1983009808
    %v1607 = vunpack.c.0.s8 %v1606
    %v1608 = vlaneseq
    %v1609 = vshrl.u32 %v1608, 7
    %v1610 = vsub.s32 %v1607, %v1609
    %v1611 = vrot.slane %v1523, %v1610
    %v1613 = vunpack.c.l.s4 1983009808
    %v1614 = vunpack.c.0.s8 %v1613
    %v1615 = vlaneseq
    %v1616 = vshrl.u32 %v1615, 7
    %v1617 = vsub.s32 %v1614, %v1616
    %v1618 = vrot.slane %v1604, %v1617
    %v1619 = vcombine.high %v1531, 0.0
    %v1621 = vunpack.c.l.s4 1983009808
    %v1622 = vunpack.c.0.s8 %v1621
    %v1623 = vlaneseq
    %v1624 = vshrl.u32 %v1623, 7
    %v1625 = vsub.s32 %v1622, %v1624
    %v1626 = vrot.slane %v1531, %v1625
    %v1628 = vunpack.c.l.s4 1983009808
    %v1629 = vunpack.c.0.s8 %v1628
    %v1630 = vlaneseq
    %v1631 = vshrl.u32 %v1630, 7
    %v1632 = vsub.s32 %v1629, %v1631
    %v1633 = vrot.slane %v1619, %v1632
    %v1634 = vcombine.low %v1611, %v1626
    %v1635 = vcombine.high %v1611, %v1626
    %v1637 = vunpack.c.l.s4 1934713408
    %v1638 = vunpack.c.0.s8 %v1637
    %v1639 = vlaneseq
    %v1640 = vshrl.u32 %v1639, 7
    %v1641 = vsub.s32 %v1638, %v1640
    %v1642 = vrot.slane %v1634, %v1641
    %v1644 = vunpack.c.l.s4 1934713408
    %v1645 = vunpack.c.0.s8 %v1644
    %v1646 = vlaneseq
    %v1647 = vshrl.u32 %v1646, 7
    %v1648 = vsub.s32 %v1645, %v1647
    %v1649 = vrot.slane %v1635, %v1648
    %v1650 = vcombine.low %v1618, %v1633
    %v1651 = vcombine.high %v1618, %v1633
    %v1653 = vunpack.c.l.s4 1934713408
    %v1654 = vunpack.c.0.s8 %v1653
    %v1655 = vlaneseq
    %v1656 = vshrl.u32 %v1655, 7
    %v1657 = vsub.s32 %v1654, %v1656
    %v1658 = vrot.slane %v1650, %v1657
    %v1660 = vunpack.c.l.s4 1934713408
    %v1661 = vunpack.c.0.s8 %v1660
    %v1662 = vlaneseq
    %v1663 = vshrl.u32 %v1662, 7
    %v1664 = vsub.s32 %v1661, %v1663
    %v1665 = vrot.slane %v1651, %v1664
    %v1666 = vcombine.high %v1642, 0.0
    %v1667 = vcombine.high %v1649, 0.0
    %v1668 = vcombine.high %v1658, 0.0
    %v1669 = vcombine.high %v1665, 0.0
    %v1670 = vcombine.high %v1524, 0.0
    %v1672 = vunpack.c.l.s4 1983009808
    %v1673 = vunpack.c.0.s8 %v1672
    %v1674 = vlaneseq
    %v1675 = vshrl.u32 %v1674, 7
    %v1676 = vsub.s32 %v1673, %v1675
    %v1677 = vrot.slane %v1524, %v1676
    %v1679 = vunpack.c.l.s4 1983009808
    %v1680 = vunpack.c.0.s8 %v1679
    %v1681 = vlaneseq
    %v1682 = vshrl.u32 %v1681, 7
    %v1683 = vsub.s32 %v1680, %v1682
    %v1684 = vrot.slane %v1670, %v1683
    %v1685 = vcombine.high %v1532, 0.0
    %v1687 = vunpack.c.l.s4 1983009808
    %v1688 = vunpack.c.0.s8 %v1687
    %v1689 = vlaneseq
    %v1690 = vshrl.u32 %v1689, 7
    %v1691 = vsub.s32 %v1688, %v1690
    %v1692 = vrot.slane %v1532, %v1691
    %v1694 = vunpack.c.l.s4 1983009808
    %v1695 = vunpack.c.0.s8 %v1694
    %v1696 = vlaneseq
    %v1697 = vshrl.u32 %v1696, 7
    %v1698 = vsub.s32 %v1695, %v1697
    %v1699 = vrot.slane %v1685, %v1698
    %v1700 = vcombine.low %v1677, %v1692
    %v1701 = vcombine.high %v1677, %v1692
    %v1703 = vunpack.c.l.s4 1934713408
    %v1704 = vunpack.c.0.s8 %v1703
    %v1705 = vlaneseq
    %v1706 = vshrl.u32 %v1705, 7
    %v1707 = vsub.s32 %v1704, %v1706
    %v1708 = vrot.slane %v1700, %v1707
    %v1710 = vunpack.c.l.s4 1934713408
    %v1711 = vunpack.c.0.s8 %v1710
    %v1712 = vlaneseq
    %v1713 = vshrl.u32 %v1712, 7
    %v1714 = vsub.s32 %v1711, %v1713
    %v1715 = vrot.slane %v1701, %v1714
    %v1716 = vcombine.low %v1684, %v1699
    %v1717 = vcombine.high %v1684, %v1699
    %v1719 = vunpack.c.l.s4 1934713408
    %v1720 = vunpack.c.0.s8 %v1719
    %v1721 = vlaneseq
    %v1722 = vshrl.u32 %v1721, 7
    %v1723 = vsub.s32 %v1720, %v1722
    %v1724 = vrot.slane %v1716, %v1723
    %v1726 = vunpack.c.l.s4 1934713408
    %v1727 = vunpack.c.0.s8 %v1726
    %v1728 = vlaneseq
    %v1729 = vshrl.u32 %v1728, 7
    %v1730 = vsub.s32 %v1727, %v1729
    %v1731 = vrot.slane %v1717, %v1730
    %v1732 = vcombine.high %v1708, 0.0
    %v1733 = vcombine.high %v1715, 0.0
    %v1734 = vcombine.high %v1724, 0.0
    %v1735 = vcombine.high %v1731, 0.0
    %v1736 = vcombine.high %v1525, 0.0
    %v1738 = vunpack.c.l.s4 1983009808
    %v1739 = vunpack.c.0.s8 %v1738
    %v1740 = vlaneseq
    %v1741 = vshrl.u32 %v1740, 7
    %v1742 = vsub.s32 %v1739, %v1741
    %v1743 = vrot.slane %v1525, %v1742
    %v1745 = vunpack.c.l.s4 1983009808
    %v1746 = vunpack.c.0.s8 %v1745
    %v1747 = vlaneseq
    %v1748 = vshrl.u32 %v1747, 7
    %v1749 = vsub.s32 %v1746, %v1748
    %v1750 = vrot.slane %v1736, %v1749
    %v1751 = vcombine.high %v1533, 0.0
    %v1753 = vunpack.c.l.s4 1983009808
    %v1754 = vunpack.c.0.s8 %v1753
    %v1755 = vlaneseq
    %v1756 = vshrl.u32 %v1755, 7
    %v1757 = vsub.s32 %v1754, %v1756
    %v1758 = vrot.slane %v1533, %v1757
    %v1760 = vunpack.c.l.s4 1983009808
    %v1761 = vunpack.c.0.s8 %v1760
    %v1762 = vlaneseq
    %v1763 = vshrl.u32 %v1762, 7
    %v1764 = vsub.s32 %v1761, %v1763
    %v1765 = vrot.slane %v1751, %v1764
    %v1766 = vcombine.low %v1743, %v1758
    %v1767 = vcombine.high %v1743, %v1758
    %v1769 = vunpack.c.l.s4 1934713408
    %v1770 = vunpack.c.0.s8 %v1769
    %v1771 = vlaneseq
    %v1772 = vshrl.u32 %v1771, 7
    %v1773 = vsub.s32 %v1770, %v1772
    %v1774 = vrot.slane %v1766, %v1773
    %v1776 = vunpack.c.l.s4 1934713408
    %v1777 = vunpack.c.0.s8 %v1776
    %v1778 = vlaneseq
    %v1779 = vshrl.u32 %v1778, 7
    %v1780 = vsub.s32 %v1777, %v1779
    %v1781 = vrot.slane %v1767, %v1780
    %v1782 = vcombine.low %v1750, %v1765
    %v1783 = vcombine.high %v1750, %v1765
    %v1785 = vunpack.c.l.s4 1934713408
    %v1786 = vunpack.c.0.s8 %v1785
    %v1787 = vlaneseq
    %v1788 = vshrl.u32 %v1787, 7
    %v1789 = vsub.s32 %v1786, %v1788
    %v1790 = vrot.slane %v1782, %v1789
    %v1792 = vunpack.c.l.s4 1934713408
    %v1793 = vunpack.c.0.s8 %v1792
    %v1794 = vlaneseq
    %v1795 = vshrl.u32 %v1794, 7
    %v1796 = vsub.s32 %v1793, %v1795
    %v1797 = vrot.slane %v1783, %v1796
    %v1798 = vcombine.high %v1774, 0.0
    %v1799 = vcombine.high %v1781, 0.0
    %v1800 = vcombine.high %v1790, 0.0
    %v1801 = vcombine.high %v1797, 0.0
    %v1802 = vcombine.high %v1526, 0.0
    %v1804 = vunpack.c.l.s4 1983009808
    %v1805 = vunpack.c.0.s8 %v1804
    %v1806 = vlaneseq
    %v1807 = vshrl.u32 %v1806, 7
    %v1808 = vsub.s32 %v1805, %v1807
    %v1809 = vrot.slane %v1526, %v1808
    %v1811 = vunpack.c.l.s4 1983009808
    %v1812 = vunpack.c.0.s8 %v1811
    %v1813 = vlaneseq
    %v1814 = vshrl.u32 %v1813, 7
    %v1815 = vsub.s32 %v1812, %v1814
    %v1816 = vrot.slane %v1802, %v1815
    %v1817 = vcombine.high %v1534, 0.0
    %v1819 = vunpack.c.l.s4 1983009808
    %v1820 = vunpack.c.0.s8 %v1819
    %v1821 = vlaneseq
    %v1822 = vshrl.u32 %v1821, 7
    %v1823 = vsub.s32 %v1820, %v1822
    %v1824 = vrot.slane %v1534, %v1823
    %v1826 = vunpack.c.l.s4 1983009808
    %v1827 = vunpack.c.0.s8 %v1826
    %v1828 = vlaneseq
    %v1829 = vshrl.u32 %v1828, 7
    %v1830 = vsub.s32 %v1827, %v1829
    %v1831 = vrot.slane %v1817, %v1830
    %v1832 = vcombine.low %v1809, %v1824
    %v1833 = vcombine.high %v1809, %v1824
    %v1835 = vunpack.c.l.s4 1934713408
    %v1836 = vunpack.c.0.s8 %v1835
    %v1837 = vlaneseq
    %v1838 = vshrl.u32 %v1837, 7
    %v1839 = vsub.s32 %v1836, %v1838
    %v1840 = vrot.slane %v1832, %v1839
    %v1842 = vunpack.c.l.s4 1934713408
    %v1843 = vunpack.c.0.s8 %v1842
    %v1844 = vlaneseq
    %v1845 = vshrl.u32 %v1844, 7
    %v1846 = vsub.s32 %v1843, %v1845
    %v1847 = vrot.slane %v1833, %v1846
    %v1848 = vcombine.low %v1816, %v1831
    %v1849 = vcombine.high %v1816, %v1831
    %v1851 = vunpack.c.l.s4 1934713408
    %v1852 = vunpack.c.0.s8 %v1851
    %v1853 = vlaneseq
    %v1854 = vshrl.u32 %v1853, 7
    %v1855 = vsub.s32 %v1852, %v1854
    %v1856 = vrot.slane %v1848, %v1855
    %v1858 = vunpack.c.l.s4 1934713408
    %v1859 = vunpack.c.0.s8 %v1858
    %v1860 = vlaneseq
    %v1861 = vshrl.u32 %v1860, 7
    %v1862 = vsub.s32 %v1859, %v1861
    %v1863 = vrot.slane %v1849, %v1862
    %v1864 = vcombine.high %v1840, 0.0
    %v1865 = vcombine.high %v1847, 0.0
    %v1866 = vcombine.high %v1856, 0.0
    %v1867 = vcombine.high %v1863, 0.0
    %v1868 = vcombine.high %v1527, 0.0
    %v1870 = vunpack.c.l.s4 1983009808
    %v1871 = vunpack.c.0.s8 %v1870
    %v1872 = vlaneseq
    %v1873 = vshrl.u32 %v1872, 7
    %v1874 = vsub.s32 %v1871, %v1873
    %v1875 = vrot.slane %v1527, %v1874
    %v1877 = vunpack.c.l.s4 1983009808
    %v1878 = vunpack.c.0.s8 %v1877
    %v1879 = vlaneseq
    %v1880 = vshrl.u32 %v1879, 7
    %v1881 = vsub.s32 %v1878, %v1880
    %v1882 = vrot.slane %v1868, %v1881
    %v1883 = vcombine.high %v1535, 0.0
    %v1885 = vunpack.c.l.s4 1983009808
    %v1886 = vunpack.c.0.s8 %v1885
    %v1887 = vlaneseq
    %v1888 = vshrl.u32 %v1887, 7
    %v1889 = vsub.s32 %v1886, %v1888
    %v1890 = vrot.slane %v1535, %v1889
    %v1892 = vunpack.c.l.s4 1983009808
    %v1893 = vunpack.c.0.s8 %v1892
    %v1894 = vlaneseq
    %v1895 = vshrl.u32 %v1894, 7
    %v1896 = vsub.s32 %v1893, %v1895
    %v1897 = vrot.slane %v1883, %v1896
    %v1898 = vcombine.low %v1875, %v1890
    %v1899 = vcombine.high %v1875, %v1890
    %v1901 = vunpack.c.l.s4 1934713408
    %v1902 = vunpack.c.0.s8 %v1901
    %v1903 = vlaneseq
    %v1904 = vshrl.u32 %v1903, 7
    %v1905 = vsub.s32 %v1902, %v1904
    %v1906 = vrot.slane %v1898, %v1905
    %v1908 = vunpack.c.l.s4 1934713408
    %v1909 = vunpack.c.0.s8 %v1908
    %v1910 = vlaneseq
    %v1911 = vshrl.u32 %v1910, 7
    %v1912 = vsub.s32 %v1909, %v1911
    %v1913 = vrot.slane %v1899, %v1912
    %v1914 = vcombine.low %v1882, %v1897
    %v1915 = vcombine.high %v1882, %v1897
    %v1917 = vunpack.c.l.s4 1934713408
    %v1918 = vunpack.c.0.s8 %v1917
    %v1919 = vlaneseq
    %v1920 = vshrl.u32 %v1919, 7
    %v1921 = vsub.s32 %v1918, %v1920
    %v1922 = vrot.slane %v1914, %v1921
    %v1924 = vunpack.c.l.s4 1934713408
    %v1925 = vunpack.c.0.s8 %v1924
    %v1926 = vlaneseq
    %v1927 = vshrl.u32 %v1926, 7
    %v1928 = vsub.s32 %v1925, %v1927
    %v1929 = vrot.slane %v1915, %v1928
    %v1930 = vcombine.high %v1906, 0.0
    %v1931 = vcombine.high %v1913, 0.0
    %v1932 = vcombine.high %v1922, 0.0
    %v1933 = vcombine.high %v1929, 0.0
    %v1934 = vcombine.high %v1528, 0.0
    %v1936 = vunpack.c.l.s4 1983009808
    %v1937 = vunpack.c.0.s8 %v1936
    %v1938 = vlaneseq
    %v1939 = vshrl.u32 %v1938, 7
    %v1940 = vsub.s32 %v1937, %v1939
    %v1941 = vrot.slane %v1528, %v1940
    %v1943 = vunpack.c.l.s4 1983009808
    %v1944 = vunpack.c.0.s8 %v1943
    %v1945 = vlaneseq
    %v1946 = vshrl.u32 %v1945, 7
    %v1947 = vsub.s32 %v1944, %v1946
    %v1948 = vrot.slane %v1934, %v1947
    %v1949 = vcombine.high %v1536, 0.0
    %v1951 = vunpack.c.l.s4 1983009808
    %v1952 = vunpack.c.0.s8 %v1951
    %v1953 = vlaneseq
    %v1954 = vshrl.u32 %v1953, 7
    %v1955 = vsub.s32 %v1952, %v1954
    %v1956 = vrot.slane %v1536, %v1955
    %v1958 = vunpack.c.l.s4 1983009808
    %v1959 = vunpack.c.0.s8 %v1958
    %v1960 = vlaneseq
    %v1961 = vshrl.u32 %v1960, 7
    %v1962 = vsub.s32 %v1959, %v1961
    %v1963 = vrot.slane %v1949, %v1962
    %v1964 = vcombine.low %v1941, %v1956
    %v1965 = vcombine.high %v1941, %v1956
    %v1967 = vunpack.c.l.s4 1934713408
    %v1968 = vunpack.c.0.s8 %v1967
    %v1969 = vlaneseq
    %v1970 = vshrl.u32 %v1969, 7
    %v1971 = vsub.s32 %v1968, %v1970
    %v1972 = vrot.slane %v1964, %v1971
    %v1974 = vunpack.c.l.s4 1934713408
    %v1975 = vunpack.c.0.s8 %v1974
    %v1976 = vlaneseq
    %v1977 = vshrl.u32 %v1976, 7
    %v1978 = vsub.s32 %v1975, %v1977
    %v1979 = vrot.slane %v1965, %v1978
    %v1980 = vcombine.low %v1948, %v1963
    %v1981 = vcombine.high %v1948, %v1963
    %v1983 = vunpack.c.l.s4 1934713408
    %v1984 = vunpack.c.0.s8 %v1983
    %v1985 = vlaneseq
    %v1986 = vshrl.u32 %v1985, 7
    %v1987 = vsub.s32 %v1984, %v1986
    %v1988 = vrot.slane %v1980, %v1987
    %v1990 = vunpack.c.l.s4 1934713408
    %v1991 = vunpack.c.0.s8 %v1990
    %v1992 = vlaneseq
    %v1993 = vshrl.u32 %v1992, 7
    %v1994 = vsub.s32 %v1991, %v1993
    %v1995 = vrot.slane %v1981, %v1994
    %v1996 = vcombine.high %v1972, 0.0
    %v1997 = vcombine.high %v1979, 0.0
    %v1998 = vcombine.high %v1988, 0.0
    %v1999 = vcombine.high %v1995, 0.0
    %v2000 = vcombine.high %v1529, 0.0
    %v2002 = vunpack.c.l.s4 1983009808
    %v2003 = vunpack.c.0.s8 %v2002
    %v2004 = vlaneseq
    %v2005 = vshrl.u32 %v2004, 7
    %v2006 = vsub.s32 %v2003, %v2005
    %v2007 = vrot.slane %v1529, %v2006
    %v2009 = vunpack.c.l.s4 1983009808
    %v2010 = vunpack.c.0.s8 %v2009
    %v2011 = vlaneseq
    %v2012 = vshrl.u32 %v2011, 7
    %v2013 = vsub.s32 %v2010, %v2012
    %v2014 = vrot.slane %v2000, %v2013
    %v2015 = vcombine.high %v1537, 0.0
    %v2017 = vunpack.c.l.s4 1983009808
    %v2018 = vunpack.c.0.s8 %v2017
    %v2019 = vlaneseq
    %v2020 = vshrl.u32 %v2019, 7
    %v2021 = vsub.s32 %v2018, %v2020
    %v2022 = vrot.slane %v1537, %v2021
    %v2024 = vunpack.c.l.s4 1983009808
    %v2025 = vunpack.c.0.s8 %v2024
    %v2026 = vlaneseq
    %v2027 = vshrl.u32 %v2026, 7
    %v2028 = vsub.s32 %v2025, %v2027
    %v2029 = vrot.slane %v2015, %v2028
    %v2030 = vcombine.low %v2007, %v2022
    %v2031 = vcombine.high %v2007, %v2022
    %v2033 = vunpack.c.l.s4 1934713408
    %v2034 = vunpack.c.0.s8 %v2033
    %v2035 = vlaneseq
    %v2036 = vshrl.u32 %v2035, 7
    %v2037 = vsub.s32 %v2034, %v2036
    %v2038 = vrot.slane %v2030, %v2037
    %v2040 = vunpack.c.l.s4 1934713408
    %v2041 = vunpack.c.0.s8 %v2040
    %v2042 = vlaneseq
    %v2043 = vshrl.u32 %v2042, 7
    %v2044 = vsub.s32 %v2041, %v2043
    %v2045 = vrot.slane %v2031, %v2044
    %v2046 = vcombine.low %v2014, %v2029
    %v2047 = vcombine.high %v2014, %v2029
    %v2049 = vunpack.c.l.s4 1934713408
    %v2050 = vunpack.c.0.s8 %v2049
    %v2051 = vlaneseq
    %v2052 = vshrl.u32 %v2051, 7
    %v2053 = vsub.s32 %v2050, %v2052
    %v2054 = vrot.slane %v2046, %v2053
    %v2056 = vunpack.c.l.s4 1934713408
    %v2057 = vunpack.c.0.s8 %v2056
    %v2058 = vlaneseq
    %v2059 = vshrl.u32 %v2058, 7
    %v2060 = vsub.s32 %v2057, %v2059
    %v2061 = vrot.slane %v2047, %v2060
    %v2062 = vcombine.high %v2038, 0.0
    %v2063 = vcombine.high %v2045, 0.0
    %v2064 = vcombine.high %v2054, 0.0
    %v2065 = vcombine.high %v2061, 0.0
    %2067 = vrot.lane.b32.xlu0 %v1600, 16
    %v2068 = vpop.permute.xlu0 %2067
    %2071 = vrot.lane.b32.xlu0 %v1583, 32
    %v2072 = vpop.permute.xlu0 %2071
    %2075 = vrot.lane.b32.xlu0 %v1601, 48
    %v2076 = vpop.permute.xlu0 %2075
    %2079 = vrot.lane.b32.xlu0 %v1592, 64
    %v2080 = vpop.permute.xlu0 %2079
    %2083 = vrot.lane.b32.xlu0 %v1602, 80
    %v2084 = vpop.permute.xlu0 %2083
    %2087 = vrot.lane.b32.xlu0 %v1599, 96
    %v2088 = vpop.permute.xlu0 %2087
    %2091 = vrot.lane.b32.xlu0 %v1603, 112
    %v2092 = vpop.permute.xlu0 %2091
    %2095 = vrot.lane.b32.xlu0 %v1666, 16
    %v2096 = vpop.permute.xlu0 %2095
    %2099 = vrot.lane.b32.xlu0 %v1649, 32
    %v2100 = vpop.permute.xlu0 %2099
    %2103 = vrot.lane.b32.xlu0 %v1667, 48
    %v2104 = vpop.permute.xlu0 %2103
    %2107 = vrot.lane.b32.xlu0 %v1658, 64
    %v2108 = vpop.permute.xlu0 %2107
    %2111 = vrot.lane.b32.xlu0 %v1668, 80
    %v2112 = vpop.permute.xlu0 %2111
    %2115 = vrot.lane.b32.xlu0 %v1665, 96
    %v2116 = vpop.permute.xlu0 %2115
    %2119 = vrot.lane.b32.xlu0 %v1669, 112
    %v2120 = vpop.permute.xlu0 %2119
    %2123 = vrot.lane.b32.xlu0 %v1732, 16
    %v2124 = vpop.permute.xlu0 %2123
    %2127 = vrot.lane.b32.xlu0 %v1715, 32
    %v2128 = vpop.permute.xlu0 %2127
    %2131 = vrot.lane.b32.xlu0 %v1733, 48
    %v2132 = vpop.permute.xlu0 %2131
    %2135 = vrot.lane.b32.xlu0 %v1724, 64
    %v2136 = vpop.permute.xlu0 %2135
    %2139 = vrot.lane.b32.xlu0 %v1734, 80
    %v2140 = vpop.permute.xlu0 %2139
    %2143 = vrot.lane.b32.xlu0 %v1731, 96
    %v2144 = vpop.permute.xlu0 %2143
    %2147 = vrot.lane.b32.xlu0 %v1735, 112
    %v2148 = vpop.permute.xlu0 %2147
    %2151 = vrot.lane.b32.xlu0 %v1798, 16
    %v2152 = vpop.permute.xlu0 %2151
    %2155 = vrot.lane.b32.xlu0 %v1781, 32
    %v2156 = vpop.permute.xlu0 %2155
    %2159 = vrot.lane.b32.xlu0 %v1799, 48
    %v2160 = vpop.permute.xlu0 %2159
    %2163 = vrot.lane.b32.xlu0 %v1790, 64
    %v2164 = vpop.permute.xlu0 %2163
    %2167 = vrot.lane.b32.xlu0 %v1800, 80
    %v2168 = vpop.permute.xlu0 %2167
    %2171 = vrot.lane.b32.xlu0 %v1797, 96
    %v2172 = vpop.permute.xlu0 %2171
    %2175 = vrot.lane.b32.xlu0 %v1801, 112
    %v2176 = vpop.permute.xlu0 %2175
    %2179 = vrot.lane.b32.xlu0 %v1864, 16
    %v2180 = vpop.permute.xlu0 %2179
    %2183 = vrot.lane.b32.xlu0 %v1847, 32
    %v2184 = vpop.permute.xlu0 %2183
    %2187 = vrot.lane.b32.xlu0 %v1865, 48
    %v2188 = vpop.permute.xlu0 %2187
    %2191 = vrot.lane.b32.xlu0 %v1856, 64
    %v2192 = vpop.permute.xlu0 %2191
    %2195 = vrot.lane.b32.xlu0 %v1866, 80
    %v2196 = vpop.permute.xlu0 %2195
    %2199 = vrot.lane.b32.xlu0 %v1863, 96
    %v2200 = vpop.permute.xlu0 %2199
    %2203 = vrot.lane.b32.xlu0 %v1867, 112
    %v2204 = vpop.permute.xlu0 %2203
    %2207 = vrot.lane.b32.xlu0 %v1930, 16
    %v2208 = vpop.permute.xlu0 %2207
    %2211 = vrot.lane.b32.xlu0 %v1913, 32
    %v2212 = vpop.permute.xlu0 %2211
    %2215 = vrot.lane.b32.xlu0 %v1931, 48
    %v2216 = vpop.permute.xlu0 %2215
    %2219 = vrot.lane.b32.xlu0 %v1922, 64
    %v2220 = vpop.permute.xlu0 %2219
    %2223 = vrot.lane.b32.xlu0 %v1932, 80
    %v2224 = vpop.permute.xlu0 %2223
    %2227 = vrot.lane.b32.xlu0 %v1929, 96
    %v2228 = vpop.permute.xlu0 %2227
    %2231 = vrot.lane.b32.xlu0 %v1933, 112
    %v2232 = vpop.permute.xlu0 %2231
    %2235 = vrot.lane.b32.xlu0 %v1996, 16
    %v2236 = vpop.permute.xlu0 %2235
    %2239 = vrot.lane.b32.xlu0 %v1979, 32
    %v2240 = vpop.permute.xlu0 %2239
    %2243 = vrot.lane.b32.xlu0 %v1997, 48
    %v2244 = vpop.permute.xlu0 %2243
    %2247 = vrot.lane.b32.xlu0 %v1988, 64
    %v2248 = vpop.permute.xlu0 %2247
    %2251 = vrot.lane.b32.xlu0 %v1998, 80
    %v2252 = vpop.permute.xlu0 %2251
    %2255 = vrot.lane.b32.xlu0 %v1995, 96
    %v2256 = vpop.permute.xlu0 %2255
    %2259 = vrot.lane.b32.xlu0 %v1999, 112
    %v2260 = vpop.permute.xlu0 %2259
    %2263 = vrot.lane.b32.xlu0 %v2062, 16
    %v2264 = vpop.permute.xlu0 %2263
    %2267 = vrot.lane.b32.xlu0 %v2045, 32
    %v2268 = vpop.permute.xlu0 %2267
    %2271 = vrot.lane.b32.xlu0 %v2063, 48
    %v2272 = vpop.permute.xlu0 %2271
    %2275 = vrot.lane.b32.xlu0 %v2054, 64
    %v2276 = vpop.permute.xlu0 %2275
    %2279 = vrot.lane.b32.xlu0 %v2064, 80
    %v2280 = vpop.permute.xlu0 %2279
    %2283 = vrot.lane.b32.xlu0 %v2061, 96
    %v2284 = vpop.permute.xlu0 %2283
    %2287 = vrot.lane.b32.xlu0 %v2065, 112
    %v2288 = vpop.permute.xlu0 %2287
    %v2290 = vsel %vm803, %v1576, %v2068
    %vm2291 = vcmask 261120
    %v2292 = vsel %vm2291, %v2290, %v2072
    %vm2293 = vcmask 392192
    %v2294 = vsel %vm2293, %v2292, %v2076
    %v2295 = vsel %vm1046, %v2294, %v2080
    %vm2296 = vcmask 654336
    %v2297 = vsel %vm2296, %v2295, %v2084
    %vm2298 = vcmask 785408
    %v2299 = vsel %vm2298, %v2297, %v2088
    %vm2300 = vcmask 916480
    %v2301 = vsel %vm2300, %v2299, %v2092
    %v2302 = vsel %vm803, %v1642, %v2096
    %v2303 = vsel %vm2291, %v2302, %v2100
    %v2304 = vsel %vm2293, %v2303, %v2104
    %v2305 = vsel %vm1046, %v2304, %v2108
    %v2306 = vsel %vm2296, %v2305, %v2112
    %v2307 = vsel %vm2298, %v2306, %v2116
    %v2308 = vsel %vm2300, %v2307, %v2120
    %v2309 = vsel %vm803, %v1708, %v2124
    %v2310 = vsel %vm2291, %v2309, %v2128
    %v2311 = vsel %vm2293, %v2310, %v2132
    %v2312 = vsel %vm1046, %v2311, %v2136
    %v2313 = vsel %vm2296, %v2312, %v2140
    %v2314 = vsel %vm2298, %v2313, %v2144
    %v2315 = vsel %vm2300, %v2314, %v2148
    %v2316 = vsel %vm803, %v1774, %v2152
    %v2317 = vsel %vm2291, %v2316, %v2156
    %v2318 = vsel %vm2293, %v2317, %v2160
    %v2319 = vsel %vm1046, %v2318, %v2164
    %v2320 = vsel %vm2296, %v2319, %v2168
    %v2321 = vsel %vm2298, %v2320, %v2172
    %v2322 = vsel %vm2300, %v2321, %v2176
    %v2323 = vsel %vm803, %v1840, %v2180
    %v2324 = vsel %vm2291, %v2323, %v2184
    %v2325 = vsel %vm2293, %v2324, %v2188
    %v2326 = vsel %vm1046, %v2325, %v2192
    %v2327 = vsel %vm2296, %v2326, %v2196
    %v2328 = vsel %vm2298, %v2327, %v2200
    %v2329 = vsel %vm2300, %v2328, %v2204
    %v2330 = vsel %vm803, %v1906, %v2208
    %v2331 = vsel %vm2291, %v2330, %v2212
    %v2332 = vsel %vm2293, %v2331, %v2216
    %v2333 = vsel %vm1046, %v2332, %v2220
    %v2334 = vsel %vm2296, %v2333, %v2224
    %v2335 = vsel %vm2298, %v2334, %v2228
    %v2336 = vsel %vm2300, %v2335, %v2232
    %v2337 = vsel %vm803, %v1972, %v2236
    %v2338 = vsel %vm2291, %v2337, %v2240
    %v2339 = vsel %vm2293, %v2338, %v2244
    %v2340 = vsel %vm1046, %v2339, %v2248
    %v2341 = vsel %vm2296, %v2340, %v2252
    %v2342 = vsel %vm2298, %v2341, %v2256
    %v2343 = vsel %vm2300, %v2342, %v2260
    %v2344 = vsel %vm803, %v2038, %v2264
    %v2345 = vsel %vm2291, %v2344, %v2268
    %v2346 = vsel %vm2293, %v2345, %v2272
    %v2347 = vsel %vm1046, %v2346, %v2276
    %v2348 = vsel %vm2296, %v2347, %v2280
    %v2349 = vsel %vm2298, %v2348, %v2284
    %v2350 = vsel %vm2300, %v2349, %v2288
    %v2359 = vcombine.low %v2301, %v2308
    %v2360 = vcombine.low %v2315, %v2322
    %v2362 = vunpack.c.l.s4 1983009808
    %v2363 = vunpack.c.0.s8 %v2362
    %v2364 = vlaneseq
    %v2365 = vshrl.u32 %v2364, 7
    %v2366 = vsub.s32 %v2363, %v2365
    %v2367 = vrot.slane %v2359, %v2366
    %v2369 = vunpack.c.l.s4 1983009808
    %v2370 = vunpack.c.0.s8 %v2369
    %v2371 = vlaneseq
    %v2372 = vshrl.u32 %v2371, 7
    %v2373 = vsub.s32 %v2370, %v2372
    %v2374 = vrot.slane %v2360, %v2373
    %v2375 = vcombine.low %v2367, %v2374
    %v2376 = vcombine.low %v2329, %v2336
    %v2377 = vcombine.low %v2343, %v2350
    %v2379 = vunpack.c.l.s4 1983009808
    %v2380 = vunpack.c.0.s8 %v2379
    %v2381 = vlaneseq
    %v2382 = vshrl.u32 %v2381, 7
    %v2383 = vsub.s32 %v2380, %v2382
    %v2384 = vrot.slane %v2376, %v2383
    %v2386 = vunpack.c.l.s4 1983009808
    %v2387 = vunpack.c.0.s8 %v2386
    %v2388 = vlaneseq
    %v2389 = vshrl.u32 %v2388, 7
    %v2390 = vsub.s32 %v2387, %v2389
    %v2391 = vrot.slane %v2377, %v2390
    %v2392 = vcombine.low %v2384, %v2391
    %2395 = vst [vmem:[#allocation2] sm:$0xff] %v2375
    %2396 = vst [vmem:[#allocation2 + $0x8] sm:$0xff] %v2392
    // Predicated region
    $region22: #{tpu_custom_call.1} parent=1 // pred_check
      _
    $region23: #{tpu_custom_call.1} parent=1 // pred_check_branch
      %2398 = sbr.rel (0) target = $region25
    $region24: #{tpu_custom_call.1} parent=1 // pred_region
      %s2400 = ssub.s32 256, 256
      %2401 = vsyncadd [#allocation3], %s2400
      %s2403 = sshll.u32 [#allocation2], 4
      %s2404 = int_to_ptr.vmem [resolvable:$true] %s2403
      %2406 = dma.vmem_to_hbm [thread:$0]  %s2404, 256, %s5, [#allocation3]
    $region25: #{tpu_custom_call.1} parent=1 // pred_fallthru
      _
    // Predicated region
    $region26: #{tpu_custom_call.1} parent=1 // pred_check
      _
    $region27: #{tpu_custom_call.1} parent=1 // pred_check_branch
      %2408 = sbr.rel (0) target = $region29
    $region28: #{tpu_custom_call.1} parent=1 // pred_region
      %2409 = dma.done [#allocation3], 256
    $region29: #{tpu_custom_call.1} parent=1 // pred_fallthru
      _
    %2410 = vsyncpa [#allocation3], 1

</llo_original>
